<compile_context>
chip_gen: v7x
topology: tpu7x:2x2x1
jax: 0.10.0
libtpu: 0.0.40
codegen_flags: <defaults>
</compile_context>

<pallas_src>
import functools

import jax
import jax.numpy as jnp
from jax.experimental import pallas as pl
from jax.experimental.pallas import tpu as pltpu

# VMEM caps are per-call; safe on v7x (64 MiB physical).  On v5e/v6e they could be
# raised toward ~100 MiB for even larger tiles.
_VMEM_CONV = 48 * 1024 * 1024
_VMEM_SMALL = 32 * 1024 * 1024
_VMEM_L1 = 48 * 1024 * 1024
_ROW_LANES = 4096          # target lanes per conv row block (bounds the live accumulator)


def _cparams(dim_sem, vmem_bytes):
    return pltpu.CompilerParams(dimension_semantics=tuple(dim_sem),
                                vmem_limit_bytes=vmem_bytes)


# ----------------------------------------------------------------------------
# Flat padded-image layout helpers (wrapper side, plain JAX / XLA)
# ----------------------------------------------------------------------------
def _flat_pad_len(h, w):
    # (H+2)*(W+2) ring-padded pixels, +2 slack for the last conv tap window, lane-aligned
    return -(-((h + 2) * (w + 2) + 2) // 128) * 128


def _flatten_pad_nchw(x):
    """(N, C, H, W) f32 -> (N, C, LPAD) f32 row-major flat map with a zero 1-px halo."""
    n, c, h, w = x.shape
    xp = jnp.pad(x, ((0, 0), (0, 0), (1, 1), (1, 1)))
    flat = xp.reshape(n, c, (h + 2) * (w + 2))
    lpad = _flat_pad_len(h, w)
    return jnp.pad(flat, ((0, 0), (0, 0), (0, lpad - flat.shape[-1])))


# ----------------------------------------------------------------------------
# In-kernel helpers (operate on refs + values; strictly 2-D matmuls, no reshapes)
# ----------------------------------------------------------------------------
def _conv3x3_flat(read_win, dst, img, w_ref, b_ref, cout, H, W, row_block, dst_off):
    """3x3 'same' conv + bias + ReLU on a zero-halo flat feature map (row stride W+2).

    For tap (dh, dw) the contribution to every output pixel of a row block is ONE
    contiguous flat window of the input, so the conv is 9 shifted-window matmuls per
    row block (bf16 operands, f32 acc) -- no im2col staging slab, no tap relayouts.
    The two wrap-around columns per output row land on the destination's halo columns
    and are re-zeroed by `_zero_side_halo` when the destination feeds another conv.
    """
    Wp = W + 2
    for h0 in range(0, H, row_block):
        th = min(row_block, H - h0)
        L = th * Wp
        acc = None
        for dh in range(3):
            for dw in range(3):
                win = read_win((h0 + dh) * Wp + dw, L)                 # (cin, L) bf16
                part = jnp.dot(w_ref[3 * dh + dw], win,
                               preferred_element_type=jnp.float32)     # (cout, L) f32
                acc = part if acc is None else acc + part
        out = jnp.maximum(acc + b_ref[...], 0.0)
        dst[img, 0:cout, pl.ds(dst_off + h0 * Wp, L)] = out.astype(dst.dtype)


def _zero_side_halo(dst, img, c, H, W):
    """Re-zero only the halo ring of a flat padded map: top strip, bottom strip and the
    interleaved left/right halo columns (adjacent pairs in the flat layout)."""
    Wp = W + 2
    dst[img, 0:c, 0:Wp + 1] = jnp.zeros((c, Wp + 1), dst.dtype)
    z2 = jnp.zeros((c, 2), dst.dtype)
    for r in range(1, H):
        dst[img, 0:c, pl.ds(r * Wp + W + 1, 2)] = z2
    dst[img, 0:c, pl.ds(H * Wp + W + 1, W + 3)] = jnp.zeros((c, W + 3), dst.dtype)


def _maxpool2_flat(src, dst, img, c, H, W):
    """2x2 max-pool between two flat padded feature maps.  Row pairs are contiguous lane
    windows; the lane-direction subsample uses exact 0/1 selection matmuls (MXU) so no
    strided lane access or lane-splitting reshape is needed."""
    Wp = W + 2
    h2, w2 = H // 2, W // 2
    Wp2 = w2 + 2
    r = jax.lax.broadcasted_iota(jnp.int32, (Wp, Wp2), 0)
    cc = jax.lax.broadcasted_iota(jnp.int32, (Wp, Wp2), 1)
    sel_a = (r == 2 * cc - 1).astype(jnp.bfloat16)     # picks padded col 2j+1 -> col j+1
    sel_b = (r == 2 * cc).astype(jnp.bfloat16)         # picks padded col 2j+2 -> col j+1
    dst[img, 0:c, 0:Wp2] = jnp.zeros((c, Wp2), dst.dtype)
    dst[img, 0:c, pl.ds((h2 + 1) * Wp2, Wp2)] = jnp.zeros((c, Wp2), dst.dtype)
    for q in range(h2):
        a = src[img, 0:c, pl.ds((2 * q + 1) * Wp, Wp)]
        b = src[img, 0:c, pl.ds((2 * q + 2) * Wp, Wp)]
        rowmax = jnp.maximum(a, b)                                     # (c, Wp)
        ev = jnp.dot(rowmax, sel_a, preferred_element_type=jnp.float32)
        od = jnp.dot(rowmax, sel_b, preferred_element_type=jnp.float32)
        dst[img, 0:c, pl.ds((q + 1) * Wp2, Wp2)] = jnp.maximum(ev, od).astype(dst.dtype)


# ----------------------------------------------------------------------------
# Pallas kernels
# ----------------------------------------------------------------------------
def _vgg_perceptual_kernel(gen_ref, real_ref, *rest, layer_dims, layer_weights,
                           H, W, row_lanes):
    """Fused: both VGG-style towers (conv3x3+ReLU, maxpool between) + weighted per-layer
    L1 for ONE (pair, batch-sample).  Generated and real images share every conv."""
    n_layers = len(layer_dims)
    wrefs = rest[0:2 * n_layers:2]
    brefs = rest[1:2 * n_layers:2]
    o_ref = rest[2 * n_layers]
    buf_a = rest[2 * n_layers + 1]
    buf_b = rest[2 * n_layers + 2]
    in_refs = (gen_ref, real_ref)

    total = jnp.float32(0.0)
    Hl, Wl = H, W
    cur = None                                            # None -> read the input refs
    for li, (cin, cout) in enumerate(layer_dims):
        if li > 0:
            pool_dst = buf_b if cur is buf_a else buf_a
            for img in range(2):
                _maxpool2_flat(cur, pool_dst, img, cin, Hl, Wl)
            Hl, Wl = Hl // 2, Wl // 2
            cur = pool_dst
        dst = buf_a if cur is not buf_a else buf_b
        Wp = Wl + 2
        rb = max(1, min(Hl, row_lanes // Wp))
        for img in range(2):
            if cur is None:
                read_win = (lambda s, L, r=in_refs[img], c=cin:
                            r[0, 0, 0:c, pl.ds(s, L)].astype(jnp.bfloat16))
            else:
                read_win = (lambda s, L, r=cur, c=cin, i=img:
                            r[i, 0:c, pl.ds(s, L)])
            _conv3x3_flat(read_win, dst, img, wrefs[li], brefs[li],
                          cout, Hl, Wl, rb, Wp + 1)
            _zero_side_halo(dst, img, cout, Hl, Wl)
        cur = dst
        # weighted per-layer L1 (valid region only; halo columns are zero in both towers)
        a = cur[0, 0:cout, pl.ds(Wp, Hl * Wp)].astype(jnp.float32)
        b = cur[1, 0:cout, pl.ds(Wp, Hl * Wp)].astype(jnp.float32)
        total = total + layer_weights[li] * (
            jnp.sum(jnp.abs(a - b)) * (1.0 / (cout * Hl * Wl)))
    o_ref[...] = jnp.full((1, 1, 1), total, jnp.float32)


def _region_conv_kernel(img_ref, w_ref, b_ref, o_ref, *, H, W, row_lanes):
    cin = img_ref.shape[1]
    cout = o_ref.shape[1]
    Wp = W + 2
    rb = max(1, min(H, row_lanes // Wp))
    read_win = (lambda s, L: img_ref[0, 0:cin, pl.ds(s, L)].astype(jnp.bfloat16))
    # output is flat (cout, H*(W+2)); the wrapper slices off the 2 wrap columns per row
    _conv3x3_flat(read_win, o_ref, 0, w_ref, b_ref, cout, H, W, rb, 0)


def _warp_kernel(theta_ref, coord_ref, cp_ref, cpar_ref, o_ref):
    th = theta_ref[0]                                  # (2, 3)
    c = coord_ref[0]                                   # (2, TN): row 0 = x, row 1 = y
    cx = c[0:1, :]
    cy = c[1:2, :]
    aff = th[:, 0:1] * cx + th[:, 1:2] * cy + th[:, 2:3]          # (2, TN)
    cpx = cp_ref[:, 0:1]
    cpy = cp_ref[:, 1:2]
    dist = jnp.abs(cx - cpx) + jnp.abs(cy - cpy)                  # (P2, TN)
    res = dist * dist * jnp.log(dist + 1e-6) * cpar_ref[0]
    tps = jnp.sum(res, axis=0, keepdims=True)                     # (1, TN)
    o_ref[0] = aff + tps               # TPS residual added to both x and y (as in ref)


def _om_l1_kernel(d_ref, g_ref, occ_ref, o_ref):
    """Fused pseudo-occlusion map + nearest 2x upsample of the half-res occlusion map
    (exact 0/1 selection matmuls) + L1, for one occlusion term."""
    B = d_ref.shape[1]
    H, W = d_ref.shape[3], d_ref.shape[4]
    h2, w2 = occ_ref.shape[3], occ_ref.shape[4]
    i_h = jax.lax.broadcasted_iota(jnp.int32, (H, h2), 0)
    k_h = jax.lax.broadcasted_iota(jnp.int32, (H, h2), 1)
    u_h = ((i_h == 2 * k_h) | (i_h == 2 * k_h + 1)).astype(jnp.float32)   # (H, h2)
    k_w = jax.lax.broadcasted_iota(jnp.int32, (w2, W), 0)
    j_w = jax.lax.broadcasted_iota(jnp.int32, (w2, W), 1)
    u_w = ((j_w == 2 * k_w) | (j_w == 2 * k_w + 1)).astype(jnp.float32)   # (w2, W)
    total = jnp.float32(0.0)
    for b in range(B):
        s = jnp.sum(d_ref[0, b] - g_ref[0, b], axis=0)          # (H, W), signed chan sum
        pom = jnp.exp(-30.0 * s * s)
        up = jnp.dot(jnp.dot(u_h, occ_ref[0, b, 0],
                             preferred_element_type=jnp.float32), u_w,
                     preferred_element_type=jnp.float32)        # (H, W) nearest upsample
        total = total + jnp.sum(jnp.abs(pom - up))
    o_ref[...] = jnp.full((1, 1, 1), total * (1.0 / (B * H * W)), jnp.float32)


def _mask_seg_l1_kernel(h_ref, m_ref, o_ref, *, sharp):
    h = h_ref[0]                                       # (B, R, H*W) lane-dense
    # torch.max(part) in the reference is a GLOBAL max of each per-region slice
    mx = jnp.max(h, axis=2, keepdims=True)
    mx = jnp.max(mx, axis=0, keepdims=True)            # (1, R, 1)
    parts = h / mx
    s = jnp.sum(parts, axis=1, keepdims=True)          # (B, 1, H*W)
    weight = jnp.maximum(jnp.ones_like(s), s)
    mask = s / weight
    if sharp:
        mask = 1.0 - jnp.exp(-100.0 * mask * mask)
    diff = jnp.abs(mask - m_ref[0])
    o_ref[...] = jnp.full((1, 1, 1), jnp.sum(diff) * (1.0 / diff.size), jnp.float32)


def _batched_l1_sum_kernel(a_ref, b_ref, o_ref, acc_ref):
    j = pl.program_id(1)

    @pl.when(j == 0)
    def _():
        acc_ref[0] = jnp.float32(0.0)

    acc_ref[0] += jnp.sum(jnp.abs(a_ref[...] - b_ref[...]))

    @pl.when(j == pl.num_programs(1) - 1)
    def _():
        o_ref[...] = jnp.full((1, 1, 1), acc_ref[0], jnp.float32)


# ----------------------------------------------------------------------------
# Pallas wrappers
# ----------------------------------------------------------------------------
def pallas_region_conv(imgs_nchw, w9, b):
    """One conv3x3+ReLU over a stack of images (grid over images, "parallel").
    bf16, channel-unpadded, lane-dense flat output (no 10->128 channel padding)."""
    x = imgs_nchw.astype(jnp.float32)
    NI, C, H, W = x.shape
    Wp = W + 2
    lpad = _flat_pad_len(H, W)
    xf = _flatten_pad_nchw(x)
    cout = w9.shape[1]
    lout = H * Wp
    out = pl.pallas_call(
        functools.partial(_region_conv_kernel, H=H, W=W, row_lanes=_ROW_LANES),
        out_shape=jax.ShapeDtypeStruct((NI, cout, lout), jnp.bfloat16),
        grid=(NI,),
        in_specs=[pl.BlockSpec((1, C, lpad), lambda i: (i, 0, 0)),
                  pl.BlockSpec(w9.shape, lambda i: (0, 0, 0)),
                  pl.BlockSpec(b.shape, lambda i: (0, 0))],
        out_specs=pl.BlockSpec((1, cout, lout), lambda i: (i, 0, 0)),
        compiler_params=_cparams(("parallel",), _VMEM_CONV),
    )(xf, w9, b)
    return out.reshape(NI, cout, H, Wp)[:, :, :, :W].astype(jnp.float32)


def pallas_warp_coordinates(theta, coords, control_points, control_params):
    """TPS warp; coordinates laid out as (bs, 2, N) so N is lane-dense, large N tiles."""
    bs = theta.shape[0]
    coords = jnp.broadcast_to(coords, (bs,) + coords.shape[1:]).astype(jnp.float32)
    n = coords.shape[1]
    ct = jnp.transpose(coords, (0, 2, 1))                         # (bs, 2, N)
    tn = min(max(128, -(-n // 128) * 128), 4096)
    npad = -(-n // tn) * tn
    ct = jnp.pad(ct, ((0, 0), (0, 0), (0, npad - n)))
    cp = control_points.astype(jnp.float32)                       # (P2, 2)
    cpar = control_params.astype(jnp.float32).reshape(bs, -1, 1)  # (bs, P2, 1)
    out = pl.pallas_call(
        _warp_kernel,
        out_shape=jax.ShapeDtypeStruct((bs, 2, npad), jnp.float32),
        grid=(bs, npad // tn),
        in_specs=[pl.BlockSpec((1, 2, 3), lambda b, j: (b, 0, 0)),
                  pl.BlockSpec((1, 2, tn), lambda b, j: (b, 0, j)),
                  pl.BlockSpec(cp.shape, lambda b, j: (0, 0)),
                  pl.BlockSpec((1,) + cpar.shape[1:], lambda b, j: (b, 0, 0))],
        out_specs=pl.BlockSpec((1, 2, tn), lambda b, j: (b, 0, j)),
        compiler_params=_cparams(("parallel", "parallel"), _VMEM_SMALL),
    )(theta.astype(jnp.float32), ct, cp, cpar)
    return jnp.transpose(out[:, :, :n], (0, 2, 1))


def pallas_om_l1(deformed_list, gt_list, occ_half_list):
    """Fused pseudo-occlusion-map + in-kernel nearest upsample + L1, batched over terms."""
    d = jnp.stack([a.astype(jnp.float32) for a in deformed_list])
    g = jnp.stack([a.astype(jnp.float32) for a in gt_list])
    occ = jnp.stack([a.astype(jnp.float32) for a in occ_half_list])
    t, B, C, H, W = d.shape
    h2, w2 = occ.shape[3], occ.shape[4]
    # TODO(synk): F.interpolate with arbitrary scale not ported; half-res maps only.
    assert H == 2 * h2 and W == 2 * w2
    out = pl.pallas_call(
        _om_l1_kernel,
        out_shape=jax.ShapeDtypeStruct((t, 1, 1), jnp.float32),
        grid=(t,),
        in_specs=[pl.BlockSpec((1, B, C, H, W), lambda i: (i, 0, 0, 0, 0)),
                  pl.BlockSpec((1, B, C, H, W), lambda i: (i, 0, 0, 0, 0)),
                  pl.BlockSpec((1, B, 1, h2, w2), lambda i: (i, 0, 0, 0, 0))],
        out_specs=pl.BlockSpec((1, 1, 1), lambda i: (i, 0, 0)),
        compiler_params=_cparams(("parallel",), _VMEM_SMALL),
    )(d, g, occ)
    return [out[i, 0, 0] for i in range(t)]


def pallas_mask_seg_l1(heat_slices, gt_masks, sharp=True):
    """Fused generate_mask + L1; (H, W) flattened so blocks are lane-dense."""
    h = jnp.stack([a.astype(jnp.float32) for a in heat_slices])
    m = jnp.stack([a.astype(jnp.float32) for a in gt_masks])
    S, B, R, H, W = h.shape
    hf = h.reshape(S, B, R, H * W)
    mf = m.reshape(S, B, 1, H * W)
    out = pl.pallas_call(
        functools.partial(_mask_seg_l1_kernel, sharp=sharp),
        out_shape=jax.ShapeDtypeStruct((S, 1, 1), jnp.float32),
        grid=(S,),
        in_specs=[pl.BlockSpec((1, B, R, H * W), lambda i: (i, 0, 0, 0)),
                  pl.BlockSpec((1, B, 1, H * W), lambda i: (i, 0, 0, 0))],
        out_specs=pl.BlockSpec((1, 1, 1), lambda i: (i, 0, 0)),
        compiler_params=_cparams(("parallel",), _VMEM_SMALL),
    )(hf, mf)
    return [out[i, 0, 0] for i in range(S)]


def _pad_flat128(a):
    flat = a.reshape(-1)
    n = flat.shape[0]
    rows = -(-n // 128)
    if rows <= 4096:
        rows_p = ((rows + 7) // 8) * 8
        row_tile = rows_p
    else:
        row_tile = 2048
        rows_p = ((rows + row_tile - 1) // row_tile) * row_tile
    flat = jnp.pad(flat, (0, rows_p * 128 - n))
    return flat.reshape(rows_p, 128), row_tile, n


def pallas_batched_l1_means(pairs):
    """Batched torch.abs(a - b).mean() terms: one pallas_call per padded-shape group
    with grid = (term, row-tile) and an SMEM running accumulator (reduction axis last)."""
    prepared = []
    for a, b in pairs:
        shape = jnp.broadcast_shapes(a.shape, b.shape)
        a = jnp.broadcast_to(a, shape).astype(jnp.float32)
        b = jnp.broadcast_to(b, shape).astype(jnp.float32)
        a2, rt, n = _pad_flat128(a)
        b2, _, _ = _pad_flat128(b)
        prepared.append((a2, b2, rt, n))
    groups = {}
    for idx, (a2, b2, rt, n) in enumerate(prepared):
        groups.setdefault((a2.shape, rt), []).append((idx, a2, b2, n))
    results = [None] * len(pairs)
    for (shape2, rt), items in groups.items():
        rows = shape2[0]
        t = len(items)
        a_stack = jnp.stack([it[1] for it in items])
        b_stack = jnp.stack([it[2] for it in items])
        sums = pl.pallas_call(
            _batched_l1_sum_kernel,
            out_shape=jax.ShapeDtypeStruct((t, 1, 1), jnp.float32),
            grid=(t, rows // rt),
            in_specs=[pl.BlockSpec((1, rt, 128), lambda i, j: (i, j, 0)),
                      pl.BlockSpec((1, rt, 128), lambda i, j: (i, j, 0))],
            out_specs=pl.BlockSpec((1, 1, 1), lambda i, j: (i, 0, 0)),
            scratch_shapes=[pltpu.SMEM((1,), jnp.float32)],
            compiler_params=_cparams(("parallel", "arbitrary"), _VMEM_L1),
        )(a_stack, b_stack)
        for pos, (idx, _, _, n) in enumerate(items):
            results[idx] = sums[pos, 0, 0] / n
    return results


# ----------------------------------------------------------------------------
# Plain-JAX glue
# ----------------------------------------------------------------------------
def make_coordinate_grid(h, w):
    x = 2.0 * (jnp.arange(w, dtype=jnp.float32) / (w - 1)) - 1.0
    y = 2.0 * (jnp.arange(h, dtype=jnp.float32) / (h - 1)) - 1.0
    xx = jnp.tile(x[None, :], (h, 1))
    yy = jnp.tile(y[:, None], (1, w))
    return jnp.stack([xx, yy], axis=-1)          # (h, w, 2), last dim = (x, y)


def grid_sample_bilinear(frame, grid):
    # frame (B,C,H,W); grid (B,H,W,2) in [-1,1], last dim = (x, y)
    # TODO(synk): torch F.grid_sample(padding_mode='reflection') approximated with
    # bilinear sampling + clamp-to-edge (gather stays at the JAX level).
    B, C, H, W = frame.shape
    gx = jnp.clip((grid[..., 0] + 1.0) * W / 2.0 - 0.5, 0.0, W - 1.0)
    gy = jnp.clip((grid[..., 1] + 1.0) * H / 2.0 - 0.5, 0.0, H - 1.0)
    x0 = jnp.floor(gx).astype(jnp.int32)
    y0 = jnp.floor(gy).astype(jnp.int32)
    x1 = jnp.clip(x0 + 1, 0, W - 1)
    y1 = jnp.clip(y0 + 1, 0, H - 1)
    wx = (gx - x0)[:, None]
    wy = (gy - y0)[:, None]
    bidx = jnp.arange(B)[:, None, None, None]
    cidx = jnp.arange(C)[None, :, None, None]

    def gather(yi, xi):
        return frame[bidx, cidx, yi[:, None], xi[:, None]]

    v00, v01 = gather(y0, x0), gather(y0, x1)
    v10, v11 = gather(y1, x0), gather(y1, x1)
    return (v00 * (1 - wx) * (1 - wy) + v01 * wx * (1 - wy)
            + v10 * (1 - wx) * wy + v11 * wx * wy)


# ----------------------------------------------------------------------------
# Transform (random TPS for equivariance)
# ----------------------------------------------------------------------------
class Transform:
    def __init__(self, key, bs, sigma_affine, sigma_tps, points_tps):
        k1, k2 = jax.random.split(key)
        noise = sigma_affine * jax.random.normal(k1, (bs, 2, 3), jnp.float32)
        self.theta = noise + jnp.eye(2, 3, dtype=jnp.float32)[None]
        self.bs = bs
        self.control_points = make_coordinate_grid(points_tps, points_tps).reshape(-1, 2)
        self.control_params = sigma_tps * jax.random.normal(
            k2, (bs, points_tps ** 2), jnp.float32)

    def warp_coordinates(self, coordinates):
        return pallas_warp_coordinates(self.theta, coordinates,
                                       self.control_points, self.control_params)

    def _warp_coordinates_jax(self, coords):
        # pure-JAX mirror of the Pallas warp kernel, used only for the autograd jacobian
        A = self.theta[:, None, :, :2]
        t = self.theta[:, None, :, 2]
        transformed = jnp.matmul(A, coords[..., None])[..., 0] + t
        dist = jnp.sum(jnp.abs(coords[:, :, None, :]
                               - self.control_points[None, None]), axis=-1)
        res = dist ** 2 * jnp.log(dist + 1e-6) * self.control_params[:, None, :]
        return transformed + jnp.sum(res, axis=2, keepdims=True)

    def jacobian(self, coordinates):
        gx = jax.grad(lambda c: self._warp_coordinates_jax(c)[..., 0].sum())(coordinates)
        gy = jax.grad(lambda c: self._warp_coordinates_jax(c)[..., 1].sum())(coordinates)
        return jnp.concatenate([gx[..., None, :], gy[..., None, :]], axis=-2)

    def transform_frame(self, frame):
        B, C, H, W = frame.shape
        grid = make_coordinate_grid(H, W).reshape(1, H * W, 2)
        warped = self.warp_coordinates(grid).reshape(self.bs, H, W, 2)
        return grid_sample_bilinear(frame, warped)


# ----------------------------------------------------------------------------
# ReconstructionModel (Pallas)
# ----------------------------------------------------------------------------
class ReconstructionModelPallas:
    def __init__(self, train_params, key, num_channels=3, num_regions=10):
        self.train_params = train_params
        self.scales = train_params['scales']
        self.loss_weights = train_params['loss_weights']
        self.num_channels = num_channels
        self.num_regions = num_regions
        self.revert_axis_swap = True   # pixelwise_flow_predictor.revert_axis_swap

        keys = jax.random.split(key, 16)
        # TODO(synk): torchvision VGG19 pretrained weights cannot be loaded; a small
        # VGG-style conv stack with deterministic synthetic weights stands in.
        self.vgg_dims = [(3, 8), (8, 16), (16, 16), (16, 32), (32, 32)]
        self.vgg_params = []
        for i, (cin, cout) in enumerate(self.vgg_dims):
            w = 0.1 * jax.random.normal(keys[i], (3, 3, cin, cout), jnp.float32)
            b = 0.01 * jax.random.normal(keys[i + 5], (cout,), jnp.float32)
            # per-tap layout (9, Cout, Cin); bf16 MXU operands, f32 accumulation/bias.
            w9 = jnp.transpose(w, (0, 1, 3, 2)).reshape(9, cout, cin).astype(jnp.bfloat16)
            self.vgg_params.append((w9, b.reshape(cout, 1)))
        # TODO(synk): real region_predictor architecture is constructor-injected and
        # not provided; stand-in = one Pallas conv + spatial softmax / soft-argmax.
        rw = 0.5 * jax.random.normal(keys[10], (3, 3, num_channels, num_regions),
                                     jnp.float32)
        rb = 0.1 * jax.random.normal(keys[11], (num_regions,), jnp.float32)
        self.rp_w = jnp.transpose(rw, (0, 1, 3, 2)).reshape(
            9, num_regions, num_channels).astype(jnp.bfloat16)
        self.rp_b = rb.reshape(num_regions, 1)
        self.vgg_mean = jnp.array([0.485, 0.456, 0.406], jnp.float32)
        self.vgg_std = jnp.array([0.229, 0.224, 0.225], jnp.float32)
        self.transform_key = keys[12]

    # ---- synthetic sub-modules ------------------------------------------------
    def region_predictor(self, img):
        feat = pallas_region_conv(img, self.rp_w, self.rp_b)    # (N, R, H, W) f32
        N, R, H, W = feat.shape
        heat = jax.nn.softmax(feat.reshape(N, R, H * W), axis=-1).reshape(N, R, H, W)
        grid = make_coordinate_grid(H, W).reshape(1, 1, H * W, 2)
        shift = jnp.sum(heat.reshape(N, R, H * W, 1) * grid, axis=2)   # (N, R, 2)
        a = 0.1 * shift[..., 0]
        c = 0.1 * shift[..., 1]
        row0 = jnp.stack([1.0 + a, c], axis=-1)
        row1 = jnp.stack([-c, 1.0 + a], axis=-1)
        affine = jnp.stack([row0, row1], axis=-2)                # (N, R, 2, 2)
        return {'heatmap': heat, 'shift': shift, 'affine': affine}

    def bg_predictor(self, source, driving):
        # TODO(synk): bg_predictor architecture not provided; identity affine stand-in.
        B = source.shape[0]
        return jnp.broadcast_to(jnp.eye(3, dtype=jnp.float32)[None], (B, 3, 3))

    def pixelwise_flow_predictor(self, source_image, driving_region_params,
                                 source_region_params, bg_params):
        # TODO(synk): real pixelwise flow predictor not provided; deterministic
        # half-resolution occlusion maps derived from the source image stand in.
        B, C, H, W = source_image.shape
        base = jnp.mean(source_image, axis=1, keepdims=True)
        small = base.reshape(B, 1, H // 2, 2, W // 2, 2).mean(axis=(3, 5))
        return {'occlusion_map_background': jax.nn.sigmoid(small),
                'occlusion_map_cloth': jax.nn.sigmoid(2.0 * small - 0.5),
                'occlusion_map_skin': jax.nn.sigmoid(0.5 * small + 0.2)}

    def generator(self, motion_params, x):
        # TODO(synk): real generator architecture not provided; deterministic blends
        # of source/driving stand in for its outputs.
        src, drv = x['source'], x['driving']
        return {
            'prediction': {'cloth': 0.6 * drv + 0.4 * src,
                           'skin': 0.5 * drv + 0.5 * src},
            'combined': 0.8 * drv + 0.2 * src,
            'deformed_source_without_cloth': 0.7 * src + 0.3 * drv,
            'deformed_source_cloth': 0.65 * src + 0.35 * drv,
            'deformed_source_background': 0.9 * src + 0.1 * drv,
            'deformed_source_skin': 0.55 * src + 0.45 * drv,
        }

    # ---- fused VGG + perceptual loss ------------------------------------------
    def pallas_vgg_perceptual(self, gen_list, real_list):
        """One pallas_call: both VGG towers + weighted per-layer L1, grid = (pair, sample)."""
        # TODO(synk): AntiAliasInterpolation2d pyramid only ported for scale == 1 (identity).
        assert list(self.scales) == [1]
        assert len(self.loss_weights['perceptual']) == len(self.vgg_params)
        mean = self.vgg_mean.reshape(1, 1, 3, 1, 1)
        std = self.vgg_std.reshape(1, 1, 3, 1, 1)
        g = (jnp.stack([a.astype(jnp.float32) for a in gen_list]) - mean) / std
        r = (jnp.stack([a.astype(jnp.float32) for a in real_list]) - mean) / std
        r = jax.lax.stop_gradient(r)                 # y_vgg[i].detach()
        P, B, C, H, W = g.shape
        lpad = _flat_pad_len(H, W)
        gf = _flatten_pad_nchw(g.reshape(P * B, C, H, W)).reshape(P, B, C, lpad)
        rf = _flatten_pad_nchw(r.reshape(P * B, C, H, W)).reshape(P, B, C, lpad)
        cmax = max(max(ci, co) for ci, co in self.vgg_dims)
        in_specs = [pl.BlockSpec((1, 1, C, lpad), lambda p, b: (p, b, 0, 0)),
                    pl.BlockSpec((1, 1, C, lpad), lambda p, b: (p, b, 0, 0))]
        args = [gf, rf]
        for wf, bf in self.vgg_params:
            in_specs.append(pl.BlockSpec(wf.shape, lambda p, b: (0, 0, 0)))
            in_specs.append(pl.BlockSpec(bf.shape, lambda p, b: (0, 0)))
            args.extend([wf, bf])
        out = pl.pallas_call(
            functools.partial(
                _vgg_perceptual_kernel,
                layer_dims=tuple(self.vgg_dims),
                layer_weights=tuple(float(w) for w in self.loss_weights['perceptual']),
                H=H, W=W, row_lanes=_ROW_LANES),
            out_shape=jax.ShapeDtypeStruct((P * B, 1, 1), jnp.float32),
            grid=(P, B),
            in_specs=in_specs,
            out_specs=pl.BlockSpec((1, 1, 1), lambda p, b: (p * B + b, 0, 0)),
            scratch_shapes=[pltpu.VMEM((2, cmax, lpad), jnp.bfloat16),
                            pltpu.VMEM((2, cmax, lpad), jnp.bfloat16)],
            compiler_params=_cparams(("parallel", "parallel"), _VMEM_CONV),
        )(*args)
        per_sample = out.reshape(P, B)
        return [per_sample[i].sum() / B for i in range(P)]

    # ---- forward ----------------------------------------------------------------
    def forward(self, x):
        B = x['source'].shape[0]
        # batch the source+driving region-predictor convs into a single launch
        both = jnp.concatenate([x['source'], x['driving']], axis=0)
        both_params = self.region_predictor(both)
        source_region_params = {k: v[:B] for k, v in both_params.items()}
        driving_region_params = {k: v[B:] for k, v in both_params.items()}
        bg_params = self.bg_predictor(x['source'], x['driving'])
        motion_params = self.pixelwise_flow_predictor(
            source_image=x['source'],
            driving_region_params=driving_region_params,
            source_region_params=source_region_params,
            bg_params=bg_params)
        generated = self.generator(motion_params, x)
        generated.update({'source_region_params': source_region_params,
                          'driving_region_params': driving_region_params})
        generated.update(motion_params)

        loss_values = {}
        predictions = generated['prediction']
        img_shape = x['source'].shape[2:]
        lw = self.loss_weights

        if 'perceptual' in lw and sum(lw['perceptual']) != 0:
            gen_list, real_list = [], []
            for k, v in predictions.items():
                gen_list.append(v[:, :3])
                real_list.append(x['driving_gt_{}'.format(k)])
            gen_list.append(generated['combined'])
            real_list.append(x['driving'])
            per_pair = self.pallas_vgg_perceptual(gen_list, real_list)
            loss_values['percep'] = sum(per_pair)   # per-layer weights applied in-kernel

        if lw['equivariance_shift'] + lw['equivariance_affine'] != 0:
            transform = Transform(self.transform_key, B,
                                  **self.train_params['transform_params'])
            transformed_frame = transform.transform_frame(x['driving'])
            transformed_region_params = self.region_predictor(transformed_frame)
            generated['transformed_frame'] = transformed_frame
            generated['transformed_region_params'] = transformed_region_params
            eq_pairs, eq_tags = [], []
            if lw['equivariance_shift'] != 0:
                warped = transform.warp_coordinates(transformed_region_params['shift'])
                eq_pairs.append((driving_region_params['shift'], warped))
                eq_tags.append('es')
            if lw['equivariance_affine'] != 0:
                jac = transform.jacobian(transformed_region_params['shift'])
                affine_transformed = jnp.matmul(jac, transformed_region_params['affine'])
                normed_driving = jnp.linalg.inv(driving_region_params['affine'])
                value = jnp.matmul(normed_driving, affine_transformed)
                if self.revert_axis_swap:
                    value = value * jnp.sign(value[:, :, 0:1, 0:1])
                eye = jnp.broadcast_to(
                    jnp.eye(2, dtype=jnp.float32).reshape(1, 1, 2, 2), value.shape)
                eq_pairs.append((eye, value))
                eq_tags.append('ea')
            if eq_pairs:
                eq_means = pallas_batched_l1_means(eq_pairs)
                for tag, m in zip(eq_tags, eq_means):
                    if tag == 'es':
                        loss_values['es'] = lw['equivariance_shift'] * m
                    else:
                        loss_values['ea'] = lw['equivariance_affine'] * m

        # batched plain L1 losses (l1 / deformed_loss / seg_op) -> one launch per group
        img_pairs, tags = [], []
        if 'l1' in lw and lw['l1'] != 0:
            for k, v in predictions.items():
                img_pairs.append((v, x['driving_gt_{}'.format(k)]))
                tags.append('l1')
            img_pairs.append((generated['combined'], x['driving']))
            tags.append('l1')
        if 'deformed_loss' in lw and lw['deformed_loss'] != 0:
            img_pairs.append((generated['deformed_source_without_cloth'],
                              x['driving_gt_without_cloth']))
            tags.append('deformed')
            img_pairs.append((generated['deformed_source_cloth'], x['driving_gt_cloth']))
            tags.append('deformed')
        if 'seg_op' in lw and lw['seg_op'] != 0:
            img_pairs.append((generated['deformed_source_skin'], x['driving_gt_skin']))
            tags.append('seg_op')
            img_pairs.append((generated['deformed_source_cloth'], x['driving_gt_cloth']))
            tags.append('seg_op')
            img_pairs.append((generated['deformed_source_background'],
                              x['driving_gt_background']))
            tags.append('seg_op')
        if img_pairs:
            means = pallas_batched_l1_means(img_pairs)
            acc = {'l1': 0.0, 'deformed': 0.0, 'seg_op': 0.0}
            for tag, m in zip(tags, means):
                acc[tag] = acc[tag] + m
            if 'l1' in lw and lw['l1'] != 0:
                loss_values['l1'] = acc['l1'] * lw['l1']
            if 'deformed_loss' in lw and lw['deformed_loss'] != 0:
                loss_values['deformed_l1'] = acc['deformed'] * lw['deformed_loss']
            if 'seg_op' in lw and lw['seg_op'] != 0:
                loss_values['seg_op'] = acc['seg_op'] * lw['seg_op']

        if 'om_l1' in lw and lw['om_l1'] != 0:
            d_list = [generated['deformed_source_background'],
                      generated['deformed_source_cloth'],
                      generated['deformed_source_skin']]
            g_list = [x['driving_gt_background'], x['driving_gt_cloth'],
                      x['driving_gt_skin']]
            occ_list = [generated['occlusion_map_background'],
                        generated['occlusion_map_cloth'],
                        generated['occlusion_map_skin']]
            # nearest-neighbour upsample of the half-res maps is fused into the kernel
            om_terms = pallas_om_l1(d_list, g_list, occ_list)
            loss_values['om_l1'] = sum(om_terms) * lw['om_l1']

        if 'segmentation' in lw and lw['segmentation'] != 0:
            sh = source_region_params['heatmap']
            dh = driving_region_params['heatmap']
            # TODO(synk): F.interpolate(mask, shape) is the identity here (heatmaps are
            # already at image resolution).
            assert sh.shape[2:] == tuple(img_shape)
            big = pallas_mask_seg_l1(
                [sh[:, :3], sh[:, 3:6], dh[:, :3], dh[:, 3:6]],
                [x['source_cloth_mask'], x['source_skin_mask'],
                 x['driving_cloth_mask'], x['driving_skin_mask']],
                sharp=True)
            small = pallas_mask_seg_l1(
                [sh[:, 6:8], sh[:, 8:10], dh[:, 6:8], dh[:, 8:10]],
                [x['source_left_hand_mask'], x['source_right_hand_mask'],
                 x['driving_left_hand_mask'], x['driving_right_hand_mask']],
                sharp=True)
            loss_values['seg'] = (sum(big) + sum(small)) * lw['segmentation']

        return loss_values, generated


# ----------------------------------------------------------------------------
# Main
# ----------------------------------------------------------------------------
def build_inputs(key, B=2, C=3, H=16, W=16):
    names = ['source', 'driving', 'driving_gt_cloth', 'driving_gt_skin',
             'driving_gt_without_cloth', 'driving_gt_background']
    mask_names = ['source_cloth_mask', 'source_skin_mask', 'driving_cloth_mask',
                  'driving_skin_mask', 'source_left_hand_mask', 'source_right_hand_mask',
                  'driving_left_hand_mask', 'driving_right_hand_mask']
    keys = jax.random.split(key, len(names) + len(mask_names))
    x = {}
    for i, n in enumerate(names):
        x[n] = jax.random.uniform(keys[i], (B, C, H, W), jnp.float32)
    for j, n in enumerate(mask_names):
        x[n] = jax.random.uniform(keys[len(names) + j], (B, 1, H, W), jnp.float32)
    return x


if __name__ == "__main__":
    key = jax.random.PRNGKey(0)
    k_model, k_data = jax.random.split(key)
    train_params = {
        'scales': [1],
        'loss_weights': {
            'perceptual': (1.0, 1.0, 1.0, 1.0, 1.0),
            'equivariance_shift': 1.0,
            'equivariance_affine': 1.0,
            'l1': 1.0,
            'deformed_loss': 1.0,
            'om_l1': 1.0,
            'segmentation': 1.0,
            'seg_op': 1.0,
        },
        'transform_params': {'sigma_affine': 0.05, 'sigma_tps': 0.005, 'points_tps': 5},
    }
    model = ReconstructionModelPallas(train_params, k_model)
    x = build_inputs(k_data)
    loss_values, generated = model.forward(x)
    loss_values = jax.block_until_ready(loss_values)
    assert all(bool(jnp.isfinite(v)) for v in loss_values.values())
    print("KERNEL_OK")
</pallas_src>

<mosaic_0001>
module attributes {stable_mosaic.version = 11 : i64} {
  func.func @_region_conv_kernel(%arg0: i32, %arg1: memref<1x3x384xf32, #tpu.memory_space<vmem>>, %arg2: memref<9x10x3xbf16, #tpu.memory_space<vmem>>, %arg3: memref<10x1xf32, #tpu.memory_space<vmem>>, %arg4: memref<1x10x288xbf16, #tpu.memory_space<vmem>>) attributes {dimension_semantics = [#tpu.dimension_semantics<parallel>], iteration_bounds = array<i64: 4>, scalar_prefetch = 0 : i64, scratch_operands = 0 : i64, tpu.core_type = #tpu.core_type<tc>, window_params = [{transform_indices = @transform_0, window_bounds = array<i64: 1, 3, 384>}, {pipeline_mode = #tpu.pipeline_mode<synchronous>, transform_indices = @transform_1, window_bounds = array<i64: 9, 10, 3>}, {pipeline_mode = #tpu.pipeline_mode<synchronous>, transform_indices = @transform_2, window_bounds = array<i64: 10, 1>}, {transform_indices = @transform_3, window_bounds = array<i64: 1, 10, 288>}]} {
    %c0 = arith.constant 0 : index
    %c0_0 = arith.constant 0 : index
    %c0_1 = arith.constant 0 : index
    %0 = vector.load %arg1[%c0, %c0_0, %c0_1] : memref<1x3x384xf32, #tpu.memory_space<vmem>>, vector<1x3x288xf32>
    %1 = vector.shape_cast %0 : vector<1x3x288xf32> to vector<3x288xf32>
    %2 = arith.truncf %1 : vector<3x288xf32> to vector<3x288xbf16>
    %c0_2 = arith.constant 0 : index
    %c0_3 = arith.constant 0 : index
    %c0_4 = arith.constant 0 : index
    %3 = vector.load %arg2[%c0_2, %c0_3, %c0_4] : memref<9x10x3xbf16, #tpu.memory_space<vmem>>, vector<1x10x3xbf16>
    %4 = vector.shape_cast %3 : vector<1x10x3xbf16> to vector<10x3xbf16>
    %cst = arith.constant dense<0.000000e+00> : vector<10x288xf32>
    %5 = tpu.matmul %4, %2, %cst {dimension_numbers = #tpu.dot_dimension_numbers<[1], [0], [0], [1], [0, 0, 1, 1], [], []>} : vector<10x3xbf16>, vector<3x288xbf16>, vector<10x288xf32> -> vector<10x288xf32>
    %c0_5 = arith.constant 0 : index
    %c0_6 = arith.constant 0 : index
    %c1 = arith.constant 1 : index
    %6 = vector.load %arg1[%c0_5, %c0_6, %c1] : memref<1x3x384xf32, #tpu.memory_space<vmem>>, vector<1x3x288xf32>
    %7 = vector.shape_cast %6 : vector<1x3x288xf32> to vector<3x288xf32>
    %8 = arith.truncf %7 : vector<3x288xf32> to vector<3x288xbf16>
    %c1_7 = arith.constant 1 : index
    %c0_8 = arith.constant 0 : index
    %c0_9 = arith.constant 0 : index
    %9 = vector.load %arg2[%c1_7, %c0_8, %c0_9] : memref<9x10x3xbf16, #tpu.memory_space<vmem>>, vector<1x10x3xbf16>
    %10 = vector.shape_cast %9 : vector<1x10x3xbf16> to vector<10x3xbf16>
    %cst_10 = arith.constant dense<0.000000e+00> : vector<10x288xf32>
    %11 = tpu.matmul %10, %8, %cst_10 {dimension_numbers = #tpu.dot_dimension_numbers<[1], [0], [0], [1], [0, 0, 1, 1], [], []>} : vector<10x3xbf16>, vector<3x288xbf16>, vector<10x288xf32> -> vector<10x288xf32>
    %12 = arith.addf %5, %11 : vector<10x288xf32>
    %c0_11 = arith.constant 0 : index
    %c0_12 = arith.constant 0 : index
    %c2 = arith.constant 2 : index
    %13 = vector.load %arg1[%c0_11, %c0_12, %c2] : memref<1x3x384xf32, #tpu.memory_space<vmem>>, vector<1x3x288xf32>
    %14 = vector.shape_cast %13 : vector<1x3x288xf32> to vector<3x288xf32>
    %15 = arith.truncf %14 : vector<3x288xf32> to vector<3x288xbf16>
    %c2_13 = arith.constant 2 : index
    %c0_14 = arith.constant 0 : index
    %c0_15 = arith.constant 0 : index
    %16 = vector.load %arg2[%c2_13, %c0_14, %c0_15] : memref<9x10x3xbf16, #tpu.memory_space<vmem>>, vector<1x10x3xbf16>
    %17 = vector.shape_cast %16 : vector<1x10x3xbf16> to vector<10x3xbf16>
    %cst_16 = arith.constant dense<0.000000e+00> : vector<10x288xf32>
    %18 = tpu.matmul %17, %15, %cst_16 {dimension_numbers = #tpu.dot_dimension_numbers<[1], [0], [0], [1], [0, 0, 1, 1], [], []>} : vector<10x3xbf16>, vector<3x288xbf16>, vector<10x288xf32> -> vector<10x288xf32>
    %19 = arith.addf %12, %18 : vector<10x288xf32>
    %c0_17 = arith.constant 0 : index
    %c0_18 = arith.constant 0 : index
    %c18 = arith.constant 18 : index
    %20 = vector.load %arg1[%c0_17, %c0_18, %c18] : memref<1x3x384xf32, #tpu.memory_space<vmem>>, vector<1x3x288xf32>
    %21 = vector.shape_cast %20 : vector<1x3x288xf32> to vector<3x288xf32>
    %22 = arith.truncf %21 : vector<3x288xf32> to vector<3x288xbf16>
    %c3 = arith.constant 3 : index
    %c0_19 = arith.constant 0 : index
    %c0_20 = arith.constant 0 : index
    %23 = vector.load %arg2[%c3, %c0_19, %c0_20] : memref<9x10x3xbf16, #tpu.memory_space<vmem>>, vector<1x10x3xbf16>
    %24 = vector.shape_cast %23 : vector<1x10x3xbf16> to vector<10x3xbf16>
    %cst_21 = arith.constant dense<0.000000e+00> : vector<10x288xf32>
    %25 = tpu.matmul %24, %22, %cst_21 {dimension_numbers = #tpu.dot_dimension_numbers<[1], [0], [0], [1], [0, 0, 1, 1], [], []>} : vector<10x3xbf16>, vector<3x288xbf16>, vector<10x288xf32> -> vector<10x288xf32>
    %26 = arith.addf %19, %25 : vector<10x288xf32>
    %c0_22 = arith.constant 0 : index
    %c0_23 = arith.constant 0 : index
    %c19 = arith.constant 19 : index
    %27 = vector.load %arg1[%c0_22, %c0_23, %c19] : memref<1x3x384xf32, #tpu.memory_space<vmem>>, vector<1x3x288xf32>
    %28 = vector.shape_cast %27 : vector<1x3x288xf32> to vector<3x288xf32>
    %29 = arith.truncf %28 : vector<3x288xf32> to vector<3x288xbf16>
    %c4 = arith.constant 4 : index
    %c0_24 = arith.constant 0 : index
    %c0_25 = arith.constant 0 : index
    %30 = vector.load %arg2[%c4, %c0_24, %c0_25] : memref<9x10x3xbf16, #tpu.memory_space<vmem>>, vector<1x10x3xbf16>
    %31 = vector.shape_cast %30 : vector<1x10x3xbf16> to vector<10x3xbf16>
    %cst_26 = arith.constant dense<0.000000e+00> : vector<10x288xf32>
    %32 = tpu.matmul %31, %29, %cst_26 {dimension_numbers = #tpu.dot_dimension_numbers<[1], [0], [0], [1], [0, 0, 1, 1], [], []>} : vector<10x3xbf16>, vector<3x288xbf16>, vector<10x288xf32> -> vector<10x288xf32>
    %33 = arith.addf %26, %32 : vector<10x288xf32>
    %c0_27 = arith.constant 0 : index
    %c0_28 = arith.constant 0 : index
    %c20 = arith.constant 20 : index
    %34 = vector.load %arg1[%c0_27, %c0_28, %c20] : memref<1x3x384xf32, #tpu.memory_space<vmem>>, vector<1x3x288xf32>
    %35 = vector.shape_cast %34 : vector<1x3x288xf32> to vector<3x288xf32>
    %36 = arith.truncf %35 : vector<3x288xf32> to vector<3x288xbf16>
    %c5 = arith.constant 5 : index
    %c0_29 = arith.constant 0 : index
    %c0_30 = arith.constant 0 : index
    %37 = vector.load %arg2[%c5, %c0_29, %c0_30] : memref<9x10x3xbf16, #tpu.memory_space<vmem>>, vector<1x10x3xbf16>
    %38 = vector.shape_cast %37 : vector<1x10x3xbf16> to vector<10x3xbf16>
    %cst_31 = arith.constant dense<0.000000e+00> : vector<10x288xf32>
    %39 = tpu.matmul %38, %36, %cst_31 {dimension_numbers = #tpu.dot_dimension_numbers<[1], [0], [0], [1], [0, 0, 1, 1], [], []>} : vector<10x3xbf16>, vector<3x288xbf16>, vector<10x288xf32> -> vector<10x288xf32>
    %40 = arith.addf %33, %39 : vector<10x288xf32>
    %c0_32 = arith.constant 0 : index
    %c0_33 = arith.constant 0 : index
    %c36 = arith.constant 36 : index
    %41 = vector.load %arg1[%c0_32, %c0_33, %c36] : memref<1x3x384xf32, #tpu.memory_space<vmem>>, vector<1x3x288xf32>
    %42 = vector.shape_cast %41 : vector<1x3x288xf32> to vector<3x288xf32>
    %43 = arith.truncf %42 : vector<3x288xf32> to vector<3x288xbf16>
    %c6 = arith.constant 6 : index
    %c0_34 = arith.constant 0 : index
    %c0_35 = arith.constant 0 : index
    %44 = vector.load %arg2[%c6, %c0_34, %c0_35] : memref<9x10x3xbf16, #tpu.memory_space<vmem>>, vector<1x10x3xbf16>
    %45 = vector.shape_cast %44 : vector<1x10x3xbf16> to vector<10x3xbf16>
    %cst_36 = arith.constant dense<0.000000e+00> : vector<10x288xf32>
    %46 = tpu.matmul %45, %43, %cst_36 {dimension_numbers = #tpu.dot_dimension_numbers<[1], [0], [0], [1], [0, 0, 1, 1], [], []>} : vector<10x3xbf16>, vector<3x288xbf16>, vector<10x288xf32> -> vector<10x288xf32>
    %47 = arith.addf %40, %46 : vector<10x288xf32>
    %c0_37 = arith.constant 0 : index
    %c0_38 = arith.constant 0 : index
    %c37 = arith.constant 37 : index
    %48 = vector.load %arg1[%c0_37, %c0_38, %c37] : memref<1x3x384xf32, #tpu.memory_space<vmem>>, vector<1x3x288xf32>
    %49 = vector.shape_cast %48 : vector<1x3x288xf32> to vector<3x288xf32>
    %50 = arith.truncf %49 : vector<3x288xf32> to vector<3x288xbf16>
    %c7 = arith.constant 7 : index
    %c0_39 = arith.constant 0 : index
    %c0_40 = arith.constant 0 : index
    %51 = vector.load %arg2[%c7, %c0_39, %c0_40] : memref<9x10x3xbf16, #tpu.memory_space<vmem>>, vector<1x10x3xbf16>
    %52 = vector.shape_cast %51 : vector<1x10x3xbf16> to vector<10x3xbf16>
    %cst_41 = arith.constant dense<0.000000e+00> : vector<10x288xf32>
    %53 = tpu.matmul %52, %50, %cst_41 {dimension_numbers = #tpu.dot_dimension_numbers<[1], [0], [0], [1], [0, 0, 1, 1], [], []>} : vector<10x3xbf16>, vector<3x288xbf16>, vector<10x288xf32> -> vector<10x288xf32>
    %54 = arith.addf %47, %53 : vector<10x288xf32>
    %c0_42 = arith.constant 0 : index
    %c0_43 = arith.constant 0 : index
    %c38 = arith.constant 38 : index
    %55 = vector.load %arg1[%c0_42, %c0_43, %c38] : memref<1x3x384xf32, #tpu.memory_space<vmem>>, vector<1x3x288xf32>
    %56 = vector.shape_cast %55 : vector<1x3x288xf32> to vector<3x288xf32>
    %57 = arith.truncf %56 : vector<3x288xf32> to vector<3x288xbf16>
    %c8 = arith.constant 8 : index
    %c0_44 = arith.constant 0 : index
    %c0_45 = arith.constant 0 : index
    %58 = vector.load %arg2[%c8, %c0_44, %c0_45] : memref<9x10x3xbf16, #tpu.memory_space<vmem>>, vector<1x10x3xbf16>
    %59 = vector.shape_cast %58 : vector<1x10x3xbf16> to vector<10x3xbf16>
    %cst_46 = arith.constant dense<0.000000e+00> : vector<10x288xf32>
    %60 = tpu.matmul %59, %57, %cst_46 {dimension_numbers = #tpu.dot_dimension_numbers<[1], [0], [0], [1], [0, 0, 1, 1], [], []>} : vector<10x3xbf16>, vector<3x288xbf16>, vector<10x288xf32> -> vector<10x288xf32>
    %61 = arith.addf %54, %60 : vector<10x288xf32>
    %c0_47 = arith.constant 0 : index
    %c0_48 = arith.constant 0 : index
    %62 = vector.load %arg3[%c0_47, %c0_48] : memref<10x1xf32, #tpu.memory_space<vmem>>, vector<10x1xf32>
    %63 = vector.broadcast %62 : vector<10x1xf32> to vector<10x288xf32>
    %64 = arith.addf %61, %63 : vector<10x288xf32>
    %cst_49 = arith.constant 0.000000e+00 : f32
    %65 = vector.broadcast %cst_49 : f32 to vector<10x288xf32>
    %66 = arith.maximumf %64, %65 : vector<10x288xf32>
    %67 = arith.truncf %66 : vector<10x288xf32> to vector<10x288xbf16>
    %c0_50 = arith.constant 0 : index
    %c0_51 = arith.constant 0 : index
    %c0_52 = arith.constant 0 : index
    %68 = vector.load %arg4[%c0_50, %c0_51, %c0_52] : memref<1x10x288xbf16, #tpu.memory_space<vmem>>, vector<1x10x288xbf16>
    %69 = vector.shape_cast %68 : vector<1x10x288xbf16> to vector<10x288xbf16>
    %70 = vector.shape_cast %67 : vector<10x288xbf16> to vector<1x10x288xbf16>
    tpu.vector_store %arg4[%c0_50, %c0_51, %c0_52], %70 {strides = array<i32>} : memref<1x10x288xbf16, #tpu.memory_space<vmem>>, vector<1x10x288xbf16>,
    return
  }
  func.func @transform_0(%arg0: i32) -> (i32, i32, i32) {
    %c0_i32 = arith.constant 0 : i32
    %c0_i32_0 = arith.constant 0 : i32
    %c0_i32_1 = arith.constant 0 : i32
    return %arg0, %c0_i32, %c0_i32_0 : i32, i32, i32
  }
  func.func @transform_1(%arg0: i32) -> (i32, i32, i32) {
    %c0_i32 = arith.constant 0 : i32
    %c0_i32_0 = arith.constant 0 : i32
    %c0_i32_1 = arith.constant 0 : i32
    %c0_i32_2 = arith.constant 0 : i32
    return %c0_i32, %c0_i32_0, %c0_i32_1 : i32, i32, i32
  }
  func.func @transform_2(%arg0: i32) -> (i32, i32) {
    %c0_i32 = arith.constant 0 : i32
    %c0_i32_0 = arith.constant 0 : i32
    %c0_i32_1 = arith.constant 0 : i32
    return %c0_i32, %c0_i32_0 : i32, i32
  }
  func.func @transform_3(%arg0: i32) -> (i32, i32, i32) {
    %c0_i32 = arith.constant 0 : i32
    %c0_i32_0 = arith.constant 0 : i32
    %c0_i32_1 = arith.constant 0 : i32
    return %arg0, %c0_i32, %c0_i32_0 : i32, i32, i32
  }
}

</mosaic_0001>

<llo_original>
// kernel: tpu_custom_call.1
$region0: #{tpu_custom_call.1}
  #allocation0 [shape = 'u32[]', space=smem, size = 0x4, offset = 0x4, fixed_abs, tag = 'smem constant byte address 0x4 - core index']
  #allocation1 [shape = 'u32[144,128]{1,0:T(1,128)}', space=vmem, size = 0x12000, scoped, tag = 'internal scratch']
  %s0 = inlined_call_operand.vmem [shape: f32[4,3,384], index: 0, kind: input, shape index: {}]
  %s1 = inlined_call_operand.vmem [shape: bf16[9,10,3], index: 1, kind: input, shape index: {}]
  %s2 = inlined_call_operand.vmem [shape: f32[10,1], index: 2, kind: input, shape index: {}]
  %s3 = inlined_call_operand.vmem [shape: bf16[4,10,288], index: 3, kind: output, shape index: {}]
  %s4 = sld [smem:[#allocation0]]
  $region45: #{tpu_custom_call.1} parent=0
    _
  %s6 = ssub.s32 1, %s4
  %s7 = scalar_select 0, %s6, %s4
  loop: start=0, step=1, limit=6
  $region2: #{tpu_custom_call.1} parent=0 // loop_pre_header
    _
  $region3: #{tpu_custom_call.1} parent=0 // loop_header
    %s9 = sphi 0, %s13
    %p10 = scmp.ge.s32.totalorder %s9, 6
    %s19 = sphi 0, %s21
    %s22 = sphi 0, %s19
    %s23 = sphi 0, %s22
    %s39 = sphi 0, %s23
    %s43 = sphi 0, %s43
    %s45 = sphi 0, %s43
    %s46 = sphi 0, %s45
    %s60 = sphi 0, %s46
    %s64 = sphi 0, %s64
    %s66 = sphi 0, %s64
    %s67 = sphi 0, %s66
    %s81 = sphi 0, %s67
    %s87 = sphi 0, %s89
    %s90 = sphi 0, %s87
    %s91 = sphi 0, %s90
    %s107 = sphi 0, %s91
  $region4: #{tpu_custom_call.1} parent=0 // loop_header_branch
    %12 = sbr.rel (%p10) target = $region8
  $region5: #{tpu_custom_call.1} parent=0 // loop_body
    %s14 = ssub.s32 %s9, 1
    %s15 = ssub.s32 %s9, 2
    %s16 = sadd.s32 %s9, 1
    %s17 = ssub.s32 %s9, %s16
    %p18 = scmp.eq.s32.totalorder %s17, 0
    %s20 = sadd.s32 %s19, 1
    %s21 = scalar_select %p18, %s19, %s20
    %p24 = pneg %p18
    %p25 = scmp.eq.s32.totalorder %s9, 3
    %p26 = por %p24, %p25
    %p27 = scmp.ne.s32.totalorder %s19, %s22
    %p28 = scmp.eq.s32.totalorder %s9, 0
    %p29 = por %p27, %p28
    %p30 = scmp.ne.s32.totalorder %s19, %s22
    %p31 = scmp.eq.s32.totalorder %s14, 3
    %p32 = por %p30, %p31
    %p33 = scmp.ne.s32.totalorder %s22, %s23
    %p34 = scmp.eq.s32.totalorder %s14, 0
    %p35 = por %p33, %p34
    %p36 = scmp.ne.s32.totalorder %s22, %s23
    %p37 = scmp.eq.s32.totalorder %s15, 3
    %p38 = por %p36, %p37
    %p40 = scmp.ne.s32.totalorder %s23, %s39
    %p41 = scmp.eq.s32.totalorder %s15, 0
    %p42 = por %p40, %p41
    %s44 = sadd.s32 %s43, 1
    %p47 = scmp.eq.s32.totalorder %s9, 3
    %p48 = scmp.ne.s32.totalorder %s43, %s45
    %p49 = scmp.eq.s32.totalorder %s9, 0
    %p50 = por %p48, %p49
    %p51 = scmp.ne.s32.totalorder %s43, %s45
    %p52 = scmp.eq.s32.totalorder %s14, 3
    %p53 = por %p51, %p52
    %p54 = scmp.ne.s32.totalorder %s45, %s46
    %p55 = scmp.eq.s32.totalorder %s14, 0
    %p56 = por %p54, %p55
    %p57 = scmp.ne.s32.totalorder %s45, %s46
    %p58 = scmp.eq.s32.totalorder %s15, 3
    %p59 = por %p57, %p58
    %p61 = scmp.ne.s32.totalorder %s46, %s60
    %p62 = scmp.eq.s32.totalorder %s15, 0
    %p63 = por %p61, %p62
    %s65 = sadd.s32 %s64, 1
    %p68 = scmp.eq.s32.totalorder %s9, 3
    %p69 = scmp.ne.s32.totalorder %s64, %s66
    %p70 = scmp.eq.s32.totalorder %s9, 0
    %p71 = por %p69, %p70
    %p72 = scmp.ne.s32.totalorder %s64, %s66
    %p73 = scmp.eq.s32.totalorder %s14, 3
    %p74 = por %p72, %p73
    %p75 = scmp.ne.s32.totalorder %s66, %s67
    %p76 = scmp.eq.s32.totalorder %s14, 0
    %p77 = por %p75, %p76
    %p78 = scmp.ne.s32.totalorder %s66, %s67
    %p79 = scmp.eq.s32.totalorder %s15, 3
    %p80 = por %p78, %p79
    %p82 = scmp.ne.s32.totalorder %s67, %s81
    %p83 = scmp.eq.s32.totalorder %s15, 0
    %p84 = por %p82, %p83
    %s85 = ssub.s32 %s9, %s16
    %p86 = scmp.eq.s32.totalorder %s85, 0
    %s88 = sadd.s32 %s87, 1
    %s89 = scalar_select %p86, %s87, %s88
    %p92 = pneg %p86
    %p93 = scmp.eq.s32.totalorder %s9, 3
    %p94 = por %p92, %p93
    %p95 = scmp.ne.s32.totalorder %s87, %s90
    %p96 = scmp.eq.s32.totalorder %s9, 0
    %p97 = por %p95, %p96
    %p98 = scmp.ne.s32.totalorder %s87, %s90
    %p99 = scmp.eq.s32.totalorder %s14, 3
    %p100 = por %p98, %p99
    %p101 = scmp.ne.s32.totalorder %s90, %s91
    %p102 = scmp.eq.s32.totalorder %s14, 0
    %p103 = por %p101, %p102
    %p104 = scmp.ne.s32.totalorder %s90, %s91
    %p105 = scmp.eq.s32.totalorder %s15, 3
    %p106 = por %p104, %p105
    %p108 = scmp.ne.s32.totalorder %s91, %s107
    %p109 = scmp.eq.s32.totalorder %s15, 0
    %p110 = por %p108, %p109
    %p111 = scmp.le.s32.totalorder 1, %s9
    %p112 = scmp.lt.s32.totalorder %s9, 5
    %p113 = pnand %p111, %p112
    %p114 = pneg %p113
    // Predicated region
    $region9: #{tpu_custom_call.1} parent=5 // pred_check
      _
    $region10: #{tpu_custom_call.1} parent=5 // pred_check_branch
      %116 = sbr.rel (%p113) target = $region12
    $region11: #{tpu_custom_call.1} parent=5 // pred_region
      %s117 = ssub.s32 %s9, 1
      // Predicated region
      $region13: #{tpu_custom_call.1} parent=11 // pred_check
        %p118 = pneg %p56
      $region14: #{tpu_custom_call.1} parent=11 // pred_check_branch
        %120 = sbr.rel (%p118) target = $region16
      $region15: #{tpu_custom_call.1} parent=11 // pred_region
        _
      $region16: #{tpu_custom_call.1} parent=11 // pred_fallthru
        _
      // Predicated region
      $region17: #{tpu_custom_call.1} parent=11 // pred_check
        %p121 = pneg %p77
      $region18: #{tpu_custom_call.1} parent=11 // pred_check_branch
        %123 = sbr.rel (%p121) target = $region20
      $region19: #{tpu_custom_call.1} parent=11 // pred_region
        _
      $region20: #{tpu_custom_call.1} parent=11 // pred_fallthru
        _
    $region12: #{tpu_custom_call.1} parent=5 // pred_fallthru
      _
    %p124 = scmp.lt.s32.totalorder %s9, 4
    // Predicated region
    $region21: #{tpu_custom_call.1} parent=5 // pred_check
      %p125 = pneg %p124
    $region22: #{tpu_custom_call.1} parent=5 // pred_check_branch
      %127 = sbr.rel (%p125) target = $region24
    $region23: #{tpu_custom_call.1} parent=5 // pred_region
      // Predicated region
      $region25: #{tpu_custom_call.1} parent=23 // pred_check
        %p128 = pneg %p29
      $region26: #{tpu_custom_call.1} parent=23 // pred_check_branch
        %130 = sbr.rel (%p128) target = $region28
      $region27: #{tpu_custom_call.1} parent=23 // pred_region
        %p131 = scmp.lt.s32.totalorder %s9, 3
        %s132 = scalar_select %p131, %s9, 3
        %s133 = smul.addr %s132, 3
        %s134 = smul.addr %s133, 4
        %s135 = scalar_lea.vmem %s0, %s134
      $region28: #{tpu_custom_call.1} parent=23 // pred_fallthru
        _
    $region24: #{tpu_custom_call.1} parent=5 // pred_fallthru
      _
    %p136 = scmp.le.s32.totalorder 1, %s9
    %p137 = scmp.lt.s32.totalorder %s9, 5
    %p138 = pnand %p136, %p137
    %p139 = pneg %p138
    // Predicated region
    $region29: #{tpu_custom_call.1} parent=5 // pred_check
      _
    $region30: #{tpu_custom_call.1} parent=5 // pred_check_branch
      %141 = sbr.rel (%p138) target = $region32
    $region31: #{tpu_custom_call.1} parent=5 // pred_region
      %s142 = ssub.s32 %s9, 1
      %p143 = scmp.lt.s32.totalorder %s14, 3
      %s144 = scalar_select %p143, %s14, 3
      %s145 = smul.addr %s144, 3
      %s146 = smul.addr %s145, 4
      %s147 = scalar_lea.vmem %s0, %s146
      %p148 = pneg %p35
      %p149 = pneg %p32
      %p150 = pneg %p56
      %p151 = pneg %p53
      %p152 = pneg %p77
      %p153 = pneg %p74
      %p154 = pneg %p103
      %p155 = pneg %p100
      %p156 = scmp.lt.s32.totalorder %s14, 3
      %s157 = scalar_select %p156, %s14, 3
      %s158 = smul.addr %s157, 6
      %s159 = smul.addr %s158, 4
      %s160 = scalar_lea.vmem %s3, %s159
      %p161 = scmp.lt.s32.totalorder %s14, 3
      %s162 = scalar_select %p161, %s14, 3
      %s163 = smul.addr %s162, 3
      %s164 = smul.addr %s163, 4
      %s165 = scalar_lea.vmem %s0, %s164
      %p166 = scmp.lt.s32.totalorder %s14, 3
      %s167 = scalar_select %p166, %s14, 3
      %s168 = smul.addr %s167, 6
      %s169 = smul.addr %s168, 4
      %s170 = scalar_lea.vmem %s3, %s169
      %v172 = vld [vmem:[%s165] sm:$0x77]
      %v173 = vld [vmem:[%s165 + $0x8] sm:$0x7]
      %v175 = vcombine.high %v172, %v172
      %v177 = vpack.c.bf16 %v172, %v172
      %v178 = vpack.c.bf16 %v175, %v175
      %v179 = vpack.c.bf16 %v173, %v173
      %v180 = vld [vmem:[%s1] sm:$0xf]
      %v181 = vld [vmem:[%s1 + $0x4] sm:$0x1]
      %s182 = scalar_lea.vmem %s1, 8
      %v183 = vld [vmem:[%s182] sm:$0xf]
      %v184 = vld [vmem:[%s182 + $0x4] sm:$0x1]
      %v187 = vunpack.c.l.b16 %v183
      %v188 = vunpack.c.l.b16 %v184
      %v189 = vpack.c.b16 %v188, %v187
      %193 = vrot.lane.b32.xlu0 %v177, 127
      %v194 = vpop.permute.xlu0 %193
      %195 = vrot.lane.b32.xlu0 %v178, 127
      %v196 = vpop.permute.xlu0 %195
      %197 = vrot.lane.b32.xlu0 %v179, 127
      %v198 = vpop.permute.xlu0 %197
      %vm199 = vcmask 1039360
      %v200 = vsel %vm199, %v194, %v196
      %v201 = vsel %vm199, %v196, %v198
      %vm202 = vcmask 23552
      %v204 = vsel %vm202, %v189, 0
      %vm206 = vcmask 1040384
      %vm207 = vcmask 1041408
      %v208 = vsel %vm206, 4294967295, 65535
      %v209 = vsel %vm207, %v208, 0
      %v211 = vand.u32 %v200, %v209
      %v214 = vand.u32 %v201, %v209
      %v217 = vand.u32 %v198, %v209
      %219 = vmatprep.subr.bf16.mxu0 %v214
      %220 = vmatpush1.bf16.msra.mxu0 %v211
      %221 = vmatprep.subr.bf16.mxu0 0
      %222 = vmatpush1.bf16.msra.mxu0 0
      %223 = vmatprep.subr.bf16.mxu0 0
      %224 = vmatpush1.bf16.msra.mxu0 0
      %225 = vmatprep.subr.bf16.mxu0 0
      %226 = vmatpush1.bf16.msra.mxu0 0
      %227 = vmatprep.subr.bf16.mxu0 0
      %228 = vmatpush1.bf16.msra.mxu0 0
      %229 = vmatprep.subr.bf16.mxu0 0
      %230 = vmatpush1.bf16.msra.mxu0 0
      %231 = vmatprep.subr.bf16.mxu0 0
      %232 = vmatpush1.bf16.msra.mxu0 0
      %233 = vmatprep.subr.bf16.mxu0 0
      %234 = vmatpush1.bf16.msra.mxu0 0
      %235 = vmatprep.subr.bf16.mxu0 0
      %236 = vmatpush1.bf16.msra.mxu0 0
      %237 = vmatprep.subr.bf16.mxu0 0
      %238 = vmatpush1.bf16.msra.mxu0 0
      %239 = vmatprep.subr.bf16.mxu0 0
      %240 = vmatpush1.bf16.msra.mxu0 0
      %241 = vmatprep.subr.bf16.mxu0 0
      %242 = vmatpush1.bf16.msra.mxu0 0
      %243 = vmatprep.subr.bf16.mxu0 0
      %244 = vmatpush1.bf16.msra.mxu0 0
      %245 = vmatprep.subr.bf16.mxu0 0
      %246 = vmatpush1.bf16.msra.mxu0 0
      %247 = vmatprep.subr.bf16.mxu0 0
      %248 = vmatpush1.bf16.msra.mxu0 0
      %249 = vmatprep.subr.bf16.mxu0 0
      %250 = vmatpush1.bf16.msra.mxu0 0
      %251 = vmatprep.mubr.bf16.mxu0 0
      %252 = vmatmul.mubr.bf16.gmra.mrb[0].mxu0 %v204
      %v253 = vpop.f32.mrb[0].mxu0
      %v254 = vadd.f32 0.0, %v253
      %v255 = vpop.f32.mrb[0].mxu0
      %v256 = vadd.f32 0.0, %v255
      %v257 = vpop.f32.mrb[0].mxu0
      %v258 = vadd.f32 0.0, %v257
      %v259 = vpop.f32.mrb[0].mxu0
      %v260 = vadd.f32 0.0, %v259
      %261 = vdwg.mxu0
      %262 = vmatprep.subr.bf16.mxu0 0
      %263 = vmatpush1.bf16.msra.mxu0 %v217
      %264 = vmatprep.subr.bf16.mxu0 0
      %265 = vmatpush1.bf16.msra.mxu0 0
      %266 = vmatprep.subr.bf16.mxu0 0
      %267 = vmatpush1.bf16.msra.mxu0 0
      %268 = vmatprep.subr.bf16.mxu0 0
      %269 = vmatpush1.bf16.msra.mxu0 0
      %270 = vmatprep.subr.bf16.mxu0 0
      %271 = vmatpush1.bf16.msra.mxu0 0
      %272 = vmatprep.subr.bf16.mxu0 0
      %273 = vmatpush1.bf16.msra.mxu0 0
      %274 = vmatprep.subr.bf16.mxu0 0
      %275 = vmatpush1.bf16.msra.mxu0 0
      %276 = vmatprep.subr.bf16.mxu0 0
      %277 = vmatpush1.bf16.msra.mxu0 0
      %278 = vmatprep.subr.bf16.mxu0 0
      %279 = vmatpush1.bf16.msra.mxu0 0
      %280 = vmatprep.subr.bf16.mxu0 0
      %281 = vmatpush1.bf16.msra.mxu0 0
      %282 = vmatprep.subr.bf16.mxu0 0
      %283 = vmatpush1.bf16.msra.mxu0 0
      %284 = vmatprep.subr.bf16.mxu0 0
      %285 = vmatpush1.bf16.msra.mxu0 0
      %286 = vmatprep.subr.bf16.mxu0 0
      %287 = vmatpush1.bf16.msra.mxu0 0
      %288 = vmatprep.subr.bf16.mxu0 0
      %289 = vmatpush1.bf16.msra.mxu0 0
      %290 = vmatprep.subr.bf16.mxu0 0
      %291 = vmatpush1.bf16.msra.mxu0 0
      %292 = vmatprep.subr.bf16.mxu0 0
      %293 = vmatpush1.bf16.msra.mxu0 0
      %294 = vmatprep.mubr.bf16.mxu0 0
      %295 = vmatmul.mubr.bf16.gmra.mrb[0].mxu0 %v204
      %v296 = vpop.f32.mrb[0].mxu0
      %v297 = vadd.f32 0.0, %v296
      %v298 = vpop.f32.mrb[0].mxu0
      %v299 = vpop.f32.mrb[0].mxu0
      %v300 = vadd.f32 0.0, %v299
      %v301 = vpop.f32.mrb[0].mxu0
      %302 = vdwg.mxu0
      %v305 = vunpack.c.l.b16 %v180
      %v306 = vunpack.c.l.b16 %v181
      %v307 = vpack.c.b16 %v306, %v305
      %v309 = vsel %vm202, %v307, 0
      %v312 = vand.u32 %v177, %v209
      %v315 = vand.u32 %v178, %v209
      %v318 = vand.u32 %v179, %v209
      %320 = vmatprep.subr.bf16.mxu0 %v315
      %321 = vmatpush1.bf16.msra.mxu0 %v312
      %322 = vmatprep.subr.bf16.mxu0 0
      %323 = vmatpush1.bf16.msra.mxu0 0
      %324 = vmatprep.subr.bf16.mxu0 0
      %325 = vmatpush1.bf16.msra.mxu0 0
      %326 = vmatprep.subr.bf16.mxu0 0
      %327 = vmatpush1.bf16.msra.mxu0 0
      %328 = vmatprep.subr.bf16.mxu0 0
      %329 = vmatpush1.bf16.msra.mxu0 0
      %330 = vmatprep.subr.bf16.mxu0 0
      %331 = vmatpush1.bf16.msra.mxu0 0
      %332 = vmatprep.subr.bf16.mxu0 0
      %333 = vmatpush1.bf16.msra.mxu0 0
      %334 = vmatprep.subr.bf16.mxu0 0
      %335 = vmatpush1.bf16.msra.mxu0 0
      %336 = vmatprep.subr.bf16.mxu0 0
      %337 = vmatpush1.bf16.msra.mxu0 0
      %338 = vmatprep.subr.bf16.mxu0 0
      %339 = vmatpush1.bf16.msra.mxu0 0
      %340 = vmatprep.subr.bf16.mxu0 0
      %341 = vmatpush1.bf16.msra.mxu0 0
      %342 = vmatprep.subr.bf16.mxu0 0
      %343 = vmatpush1.bf16.msra.mxu0 0
      %344 = vmatprep.subr.bf16.mxu0 0
      %345 = vmatpush1.bf16.msra.mxu0 0
      %346 = vmatprep.subr.bf16.mxu0 0
      %347 = vmatpush1.bf16.msra.mxu0 0
      %348 = vmatprep.subr.bf16.mxu0 0
      %349 = vmatpush1.bf16.msra.mxu0 0
      %350 = vmatprep.subr.bf16.mxu0 0
      %351 = vmatpush1.bf16.msra.mxu0 0
      %352 = vmatprep.mubr.bf16.mxu0 0
      %353 = vmatmul.mubr.bf16.gmra.mrb[0].mxu0 %v309
      %v354 = vpop.f32.mrb[0].mxu0
      %v355 = vadd.f32 %v254, %v354
      %v356 = vpop.f32.mrb[0].mxu0
      %v357 = vadd.f32 %v256, %v356
      %v358 = vpop.f32.mrb[0].mxu0
      %v359 = vadd.f32 %v258, %v358
      %v360 = vpop.f32.mrb[0].mxu0
      %v361 = vadd.f32 %v260, %v360
      %362 = vdwg.mxu0
      %363 = vmatprep.subr.bf16.mxu0 0
      %364 = vmatpush1.bf16.msra.mxu0 %v318
      %365 = vmatprep.subr.bf16.mxu0 0
      %366 = vmatpush1.bf16.msra.mxu0 0
      %367 = vmatprep.subr.bf16.mxu0 0
      %368 = vmatpush1.bf16.msra.mxu0 0
      %369 = vmatprep.subr.bf16.mxu0 0
      %370 = vmatpush1.bf16.msra.mxu0 0
      %371 = vmatprep.subr.bf16.mxu0 0
      %372 = vmatpush1.bf16.msra.mxu0 0
      %373 = vmatprep.subr.bf16.mxu0 0
      %374 = vmatpush1.bf16.msra.mxu0 0
      %375 = vmatprep.subr.bf16.mxu0 0
      %376 = vmatpush1.bf16.msra.mxu0 0
      %377 = vmatprep.subr.bf16.mxu0 0
      %378 = vmatpush1.bf16.msra.mxu0 0
      %379 = vmatprep.subr.bf16.mxu0 0
      %380 = vmatpush1.bf16.msra.mxu0 0
      %381 = vmatprep.subr.bf16.mxu0 0
      %382 = vmatpush1.bf16.msra.mxu0 0
      %383 = vmatprep.subr.bf16.mxu0 0
      %384 = vmatpush1.bf16.msra.mxu0 0
      %385 = vmatprep.subr.bf16.mxu0 0
      %386 = vmatpush1.bf16.msra.mxu0 0
      %387 = vmatprep.subr.bf16.mxu0 0
      %388 = vmatpush1.bf16.msra.mxu0 0
      %389 = vmatprep.subr.bf16.mxu0 0
      %390 = vmatpush1.bf16.msra.mxu0 0
      %391 = vmatprep.subr.bf16.mxu0 0
      %392 = vmatpush1.bf16.msra.mxu0 0
      %393 = vmatprep.subr.bf16.mxu0 0
      %394 = vmatpush1.bf16.msra.mxu0 0
      %395 = vmatprep.mubr.bf16.mxu0 0
      %396 = vmatmul.mubr.bf16.gmra.mrb[0].mxu0 %v309
      %v397 = vpop.f32.mrb[0].mxu0
      %v398 = vadd.f32 %v297, %v397
      %v399 = vpop.f32.mrb[0].mxu0
      %v400 = vpop.f32.mrb[0].mxu0
      %v401 = vadd.f32 %v300, %v400
      %v402 = vpop.f32.mrb[0].mxu0
      %403 = vdwg.mxu0
      %v404 = vld [vmem:[%s165] sm:$0x77]
      %v405 = vld [vmem:[%s165 + $0x8] sm:$0x7]
      %v407 = vcombine.high %v404, %v404
      %v409 = vpack.c.bf16 %v404, %v404
      %v410 = vpack.c.bf16 %v407, %v407
      %v411 = vpack.c.bf16 %v405, %v405
      %s412 = scalar_lea.vmem %s1, 16
      %v413 = vld [vmem:[%s412] sm:$0xf]
      %v414 = vld [vmem:[%s412 + $0x4] sm:$0x1]
      %v417 = vunpack.c.l.b16 %v413
      %v418 = vunpack.c.l.b16 %v414
      %v419 = vpack.c.b16 %v418, %v417
      %423 = vrot.lane.b32.xlu0 %v409, 126
      %v424 = vpop.permute.xlu0 %423
      %425 = vrot.lane.b32.xlu0 %v410, 126
      %v426 = vpop.permute.xlu0 %425
      %427 = vrot.lane.b32.xlu0 %v411, 126
      %v428 = vpop.permute.xlu0 %427
      %vm429 = vcmask 1031168
      %v430 = vsel %vm429, %v424, %v426
      %v431 = vsel %vm429, %v426, %v428
      %v433 = vsel %vm202, %v419, 0
      %v436 = vand.u32 %v430, %v209
      %v439 = vand.u32 %v431, %v209
      %v442 = vand.u32 %v428, %v209
      %444 = vmatprep.subr.bf16.mxu0 %v439
      %445 = vmatpush1.bf16.msra.mxu0 %v436
      %446 = vmatprep.subr.bf16.mxu0 0
      %447 = vmatpush1.bf16.msra.mxu0 0
      %448 = vmatprep.subr.bf16.mxu0 0
      %449 = vmatpush1.bf16.msra.mxu0 0
      %450 = vmatprep.subr.bf16.mxu0 0
      %451 = vmatpush1.bf16.msra.mxu0 0
      %452 = vmatprep.subr.bf16.mxu0 0
      %453 = vmatpush1.bf16.msra.mxu0 0
      %454 = vmatprep.subr.bf16.mxu0 0
      %455 = vmatpush1.bf16.msra.mxu0 0
      %456 = vmatprep.subr.bf16.mxu0 0
      %457 = vmatpush1.bf16.msra.mxu0 0
      %458 = vmatprep.subr.bf16.mxu0 0
      %459 = vmatpush1.bf16.msra.mxu0 0
      %460 = vmatprep.subr.bf16.mxu0 0
      %461 = vmatpush1.bf16.msra.mxu0 0
      %462 = vmatprep.subr.bf16.mxu0 0
      %463 = vmatpush1.bf16.msra.mxu0 0
      %464 = vmatprep.subr.bf16.mxu0 0
      %465 = vmatpush1.bf16.msra.mxu0 0
      %466 = vmatprep.subr.bf16.mxu0 0
      %467 = vmatpush1.bf16.msra.mxu0 0
      %468 = vmatprep.subr.bf16.mxu0 0
      %469 = vmatpush1.bf16.msra.mxu0 0
      %470 = vmatprep.subr.bf16.mxu0 0
      %471 = vmatpush1.bf16.msra.mxu0 0
      %472 = vmatprep.subr.bf16.mxu0 0
      %473 = vmatpush1.bf16.msra.mxu0 0
      %474 = vmatprep.subr.bf16.mxu0 0
      %475 = vmatpush1.bf16.msra.mxu0 0
      %476 = vmatprep.mubr.bf16.mxu0 0
      %477 = vmatmul.mubr.bf16.gmra.mrb[0].mxu0 %v433
      %v478 = vpop.f32.mrb[0].mxu0
      %v479 = vadd.f32 0.0, %v478
      %v480 = vpop.f32.mrb[0].mxu0
      %v481 = vadd.f32 0.0, %v480
      %v482 = vpop.f32.mrb[0].mxu0
      %v483 = vadd.f32 0.0, %v482
      %v484 = vpop.f32.mrb[0].mxu0
      %v485 = vadd.f32 0.0, %v484
      %486 = vdwg.mxu0
      %487 = vmatprep.subr.bf16.mxu0 0
      %488 = vmatpush1.bf16.msra.mxu0 %v442
      %489 = vmatprep.subr.bf16.mxu0 0
      %490 = vmatpush1.bf16.msra.mxu0 0
      %491 = vmatprep.subr.bf16.mxu0 0
      %492 = vmatpush1.bf16.msra.mxu0 0
      %493 = vmatprep.subr.bf16.mxu0 0
      %494 = vmatpush1.bf16.msra.mxu0 0
      %495 = vmatprep.subr.bf16.mxu0 0
      %496 = vmatpush1.bf16.msra.mxu0 0
      %497 = vmatprep.subr.bf16.mxu0 0
      %498 = vmatpush1.bf16.msra.mxu0 0
      %499 = vmatprep.subr.bf16.mxu0 0
      %500 = vmatpush1.bf16.msra.mxu0 0
      %501 = vmatprep.subr.bf16.mxu0 0
      %502 = vmatpush1.bf16.msra.mxu0 0
      %503 = vmatprep.subr.bf16.mxu0 0
      %504 = vmatpush1.bf16.msra.mxu0 0
      %505 = vmatprep.subr.bf16.mxu0 0
      %506 = vmatpush1.bf16.msra.mxu0 0
      %507 = vmatprep.subr.bf16.mxu0 0
      %508 = vmatpush1.bf16.msra.mxu0 0
      %509 = vmatprep.subr.bf16.mxu0 0
      %510 = vmatpush1.bf16.msra.mxu0 0
      %511 = vmatprep.subr.bf16.mxu0 0
      %512 = vmatpush1.bf16.msra.mxu0 0
      %513 = vmatprep.subr.bf16.mxu0 0
      %514 = vmatpush1.bf16.msra.mxu0 0
      %515 = vmatprep.subr.bf16.mxu0 0
      %516 = vmatpush1.bf16.msra.mxu0 0
      %517 = vmatprep.subr.bf16.mxu0 0
      %518 = vmatpush1.bf16.msra.mxu0 0
      %519 = vmatprep.mubr.bf16.mxu0 0
      %520 = vmatmul.mubr.bf16.gmra.mrb[0].mxu0 %v433
      %v521 = vpop.f32.mrb[0].mxu0
      %v522 = vadd.f32 0.0, %v521
      %v523 = vpop.f32.mrb[0].mxu0
      %v524 = vpop.f32.mrb[0].mxu0
      %v525 = vadd.f32 0.0, %v524
      %v526 = vpop.f32.mrb[0].mxu0
      %527 = vdwg.mxu0
      %v528 = vadd.f32 %v355, %v479
      %v529 = vadd.f32 %v357, %v481
      %v530 = vadd.f32 %v398, %v522
      %v531 = vadd.f32 %v359, %v483
      %v532 = vadd.f32 %v361, %v485
      %v533 = vadd.f32 %v401, %v525
      %v534 = vld [vmem:[%s165] sm:$0x77]
      %v535 = vld [vmem:[%s165 + $0x8] sm:$0x7]
      %v537 = vcombine.high %v534, %v534
      %v539 = vpack.c.bf16 %v534, %v534
      %v540 = vpack.c.bf16 %v537, %v537
      %v541 = vpack.c.bf16 %v535, %v535
      %s542 = scalar_lea.vmem %s1, 24
      %v543 = vld [vmem:[%s542] sm:$0xf]
      %v544 = vld [vmem:[%s542 + $0x4] sm:$0x1]
      %v547 = vunpack.c.l.b16 %v543
      %v548 = vunpack.c.l.b16 %v544
      %v549 = vpack.c.b16 %v548, %v547
      %553 = vrot.lane.b32.xlu0 %v539, 110
      %v554 = vpop.permute.xlu0 %553
      %555 = vrot.lane.b32.xlu0 %v540, 110
      %v556 = vpop.permute.xlu0 %555
      %557 = vrot.lane.b32.xlu0 %v541, 110
      %v558 = vpop.permute.xlu0 %557
      %vm559 = vcmask 900096
      %v560 = vsel %vm559, %v554, %v556
      %v561 = vsel %vm559, %v556, %v558
      %v563 = vsel %vm202, %v549, 0
      %v566 = vand.u32 %v560, %v209
      %v569 = vand.u32 %v561, %v209
      %v572 = vand.u32 %v558, %v209
      %574 = vmatprep.subr.bf16.mxu0 %v569
      %575 = vmatpush1.bf16.msra.mxu0 %v566
      %576 = vmatprep.subr.bf16.mxu0 0
      %577 = vmatpush1.bf16.msra.mxu0 0
      %578 = vmatprep.subr.bf16.mxu0 0
      %579 = vmatpush1.bf16.msra.mxu0 0
      %580 = vmatprep.subr.bf16.mxu0 0
      %581 = vmatpush1.bf16.msra.mxu0 0
      %582 = vmatprep.subr.bf16.mxu0 0
      %583 = vmatpush1.bf16.msra.mxu0 0
      %584 = vmatprep.subr.bf16.mxu0 0
      %585 = vmatpush1.bf16.msra.mxu0 0
      %586 = vmatprep.subr.bf16.mxu0 0
      %587 = vmatpush1.bf16.msra.mxu0 0
      %588 = vmatprep.subr.bf16.mxu0 0
      %589 = vmatpush1.bf16.msra.mxu0 0
      %590 = vmatprep.subr.bf16.mxu0 0
      %591 = vmatpush1.bf16.msra.mxu0 0
      %592 = vmatprep.subr.bf16.mxu0 0
      %593 = vmatpush1.bf16.msra.mxu0 0
      %594 = vmatprep.subr.bf16.mxu0 0
      %595 = vmatpush1.bf16.msra.mxu0 0
      %596 = vmatprep.subr.bf16.mxu0 0
      %597 = vmatpush1.bf16.msra.mxu0 0
      %598 = vmatprep.subr.bf16.mxu0 0
      %599 = vmatpush1.bf16.msra.mxu0 0
      %600 = vmatprep.subr.bf16.mxu0 0
      %601 = vmatpush1.bf16.msra.mxu0 0
      %602 = vmatprep.subr.bf16.mxu0 0
      %603 = vmatpush1.bf16.msra.mxu0 0
      %604 = vmatprep.subr.bf16.mxu0 0
      %605 = vmatpush1.bf16.msra.mxu0 0
      %606 = vmatprep.mubr.bf16.mxu0 0
      %607 = vmatmul.mubr.bf16.gmra.mrb[0].mxu0 %v563
      %v608 = vpop.f32.mrb[0].mxu0
      %v609 = vadd.f32 0.0, %v608
      %v610 = vpop.f32.mrb[0].mxu0
      %v611 = vadd.f32 0.0, %v610
      %v612 = vpop.f32.mrb[0].mxu0
      %v613 = vadd.f32 0.0, %v612
      %v614 = vpop.f32.mrb[0].mxu0
      %v615 = vadd.f32 0.0, %v614
      %616 = vdwg.mxu0
      %617 = vmatprep.subr.bf16.mxu0 0
      %618 = vmatpush1.bf16.msra.mxu0 %v572
      %619 = vmatprep.subr.bf16.mxu0 0
      %620 = vmatpush1.bf16.msra.mxu0 0
      %621 = vmatprep.subr.bf16.mxu0 0
      %622 = vmatpush1.bf16.msra.mxu0 0
      %623 = vmatprep.subr.bf16.mxu0 0
      %624 = vmatpush1.bf16.msra.mxu0 0
      %625 = vmatprep.subr.bf16.mxu0 0
      %626 = vmatpush1.bf16.msra.mxu0 0
      %627 = vmatprep.subr.bf16.mxu0 0
      %628 = vmatpush1.bf16.msra.mxu0 0
      %629 = vmatprep.subr.bf16.mxu0 0
      %630 = vmatpush1.bf16.msra.mxu0 0
      %631 = vmatprep.subr.bf16.mxu0 0
      %632 = vmatpush1.bf16.msra.mxu0 0
      %633 = vmatprep.subr.bf16.mxu0 0
      %634 = vmatpush1.bf16.msra.mxu0 0
      %635 = vmatprep.subr.bf16.mxu0 0
      %636 = vmatpush1.bf16.msra.mxu0 0
      %637 = vmatprep.subr.bf16.mxu0 0
      %638 = vmatpush1.bf16.msra.mxu0 0
      %639 = vmatprep.subr.bf16.mxu0 0
      %640 = vmatpush1.bf16.msra.mxu0 0
      %641 = vmatprep.subr.bf16.mxu0 0
      %642 = vmatpush1.bf16.msra.mxu0 0
      %643 = vmatprep.subr.bf16.mxu0 0
      %644 = vmatpush1.bf16.msra.mxu0 0
      %645 = vmatprep.subr.bf16.mxu0 0
      %646 = vmatpush1.bf16.msra.mxu0 0
      %647 = vmatprep.subr.bf16.mxu0 0
      %648 = vmatpush1.bf16.msra.mxu0 0
      %649 = vmatprep.mubr.bf16.mxu0 0
      %650 = vmatmul.mubr.bf16.gmra.mrb[0].mxu0 %v563
      %v651 = vpop.f32.mrb[0].mxu0
      %v652 = vadd.f32 0.0, %v651
      %v653 = vpop.f32.mrb[0].mxu0
      %v654 = vpop.f32.mrb[0].mxu0
      %v655 = vadd.f32 0.0, %v654
      %v656 = vpop.f32.mrb[0].mxu0
      %657 = vdwg.mxu0
      %v658 = vadd.f32 %v528, %v609
      %v659 = vadd.f32 %v529, %v611
      %v660 = vadd.f32 %v530, %v652
      %v661 = vadd.f32 %v531, %v613
      %v662 = vadd.f32 %v532, %v615
      %v663 = vadd.f32 %v533, %v655
      %v664 = vld [vmem:[%s165] sm:$0x77]
      %v665 = vld [vmem:[%s165 + $0x8] sm:$0x7]
      %v667 = vcombine.high %v664, %v664
      %v669 = vpack.c.bf16 %v664, %v664
      %v670 = vpack.c.bf16 %v667, %v667
      %v671 = vpack.c.bf16 %v665, %v665
      %s672 = scalar_lea.vmem %s1, 32
      %v673 = vld [vmem:[%s672] sm:$0xf]
      %v674 = vld [vmem:[%s672 + $0x4] sm:$0x1]
      %v677 = vunpack.c.l.b16 %v673
      %v678 = vunpack.c.l.b16 %v674
      %v679 = vpack.c.b16 %v678, %v677
      %683 = vrot.lane.b32.xlu0 %v669, 109
      %v684 = vpop.permute.xlu0 %683
      %685 = vrot.lane.b32.xlu0 %v670, 109
      %v686 = vpop.permute.xlu0 %685
      %687 = vrot.lane.b32.xlu0 %v671, 109
      %v688 = vpop.permute.xlu0 %687
      %vm689 = vcmask 891904
      %v690 = vsel %vm689, %v684, %v686
      %v691 = vsel %vm689, %v686, %v688
      %v693 = vsel %vm202, %v679, 0
      %v696 = vand.u32 %v690, %v209
      %v699 = vand.u32 %v691, %v209
      %v702 = vand.u32 %v688, %v209
      %704 = vmatprep.subr.bf16.mxu0 %v699
      %705 = vmatpush1.bf16.msra.mxu0 %v696
      %706 = vmatprep.subr.bf16.mxu0 0
      %707 = vmatpush1.bf16.msra.mxu0 0
      %708 = vmatprep.subr.bf16.mxu0 0
      %709 = vmatpush1.bf16.msra.mxu0 0
      %710 = vmatprep.subr.bf16.mxu0 0
      %711 = vmatpush1.bf16.msra.mxu0 0
      %712 = vmatprep.subr.bf16.mxu0 0
      %713 = vmatpush1.bf16.msra.mxu0 0
      %714 = vmatprep.subr.bf16.mxu0 0
      %715 = vmatpush1.bf16.msra.mxu0 0
      %716 = vmatprep.subr.bf16.mxu0 0
      %717 = vmatpush1.bf16.msra.mxu0 0
      %718 = vmatprep.subr.bf16.mxu0 0
      %719 = vmatpush1.bf16.msra.mxu0 0
      %720 = vmatprep.subr.bf16.mxu0 0
      %721 = vmatpush1.bf16.msra.mxu0 0
      %722 = vmatprep.subr.bf16.mxu0 0
      %723 = vmatpush1.bf16.msra.mxu0 0
      %724 = vmatprep.subr.bf16.mxu0 0
      %725 = vmatpush1.bf16.msra.mxu0 0
      %726 = vmatprep.subr.bf16.mxu0 0
      %727 = vmatpush1.bf16.msra.mxu0 0
      %728 = vmatprep.subr.bf16.mxu0 0
      %729 = vmatpush1.bf16.msra.mxu0 0
      %730 = vmatprep.subr.bf16.mxu0 0
      %731 = vmatpush1.bf16.msra.mxu0 0
      %732 = vmatprep.subr.bf16.mxu0 0
      %733 = vmatpush1.bf16.msra.mxu0 0
      %734 = vmatprep.subr.bf16.mxu0 0
      %735 = vmatpush1.bf16.msra.mxu0 0
      %736 = vmatprep.mubr.bf16.mxu0 0
      %737 = vmatmul.mubr.bf16.gmra.mrb[0].mxu0 %v693
      %v738 = vpop.f32.mrb[0].mxu0
      %v739 = vadd.f32 0.0, %v738
      %v740 = vpop.f32.mrb[0].mxu0
      %v741 = vadd.f32 0.0, %v740
      %v742 = vpop.f32.mrb[0].mxu0
      %v743 = vadd.f32 0.0, %v742
      %v744 = vpop.f32.mrb[0].mxu0
      %v745 = vadd.f32 0.0, %v744
      %746 = vdwg.mxu0
      %747 = vmatprep.subr.bf16.mxu0 0
      %748 = vmatpush1.bf16.msra.mxu0 %v702
      %749 = vmatprep.subr.bf16.mxu0 0
      %750 = vmatpush1.bf16.msra.mxu0 0
      %751 = vmatprep.subr.bf16.mxu0 0
      %752 = vmatpush1.bf16.msra.mxu0 0
      %753 = vmatprep.subr.bf16.mxu0 0
      %754 = vmatpush1.bf16.msra.mxu0 0
      %755 = vmatprep.subr.bf16.mxu0 0
      %756 = vmatpush1.bf16.msra.mxu0 0
      %757 = vmatprep.subr.bf16.mxu0 0
      %758 = vmatpush1.bf16.msra.mxu0 0
      %759 = vmatprep.subr.bf16.mxu0 0
      %760 = vmatpush1.bf16.msra.mxu0 0
      %761 = vmatprep.subr.bf16.mxu0 0
      %762 = vmatpush1.bf16.msra.mxu0 0
      %763 = vmatprep.subr.bf16.mxu0 0
      %764 = vmatpush1.bf16.msra.mxu0 0
      %765 = vmatprep.subr.bf16.mxu0 0
      %766 = vmatpush1.bf16.msra.mxu0 0
      %767 = vmatprep.subr.bf16.mxu0 0
      %768 = vmatpush1.bf16.msra.mxu0 0
      %769 = vmatprep.subr.bf16.mxu0 0
      %770 = vmatpush1.bf16.msra.mxu0 0
      %771 = vmatprep.subr.bf16.mxu0 0
      %772 = vmatpush1.bf16.msra.mxu0 0
      %773 = vmatprep.subr.bf16.mxu0 0
      %774 = vmatpush1.bf16.msra.mxu0 0
      %775 = vmatprep.subr.bf16.mxu0 0
      %776 = vmatpush1.bf16.msra.mxu0 0
      %777 = vmatprep.subr.bf16.mxu0 0
      %778 = vmatpush1.bf16.msra.mxu0 0
      %779 = vmatprep.mubr.bf16.mxu0 0
      %780 = vmatmul.mubr.bf16.gmra.mrb[0].mxu0 %v693
      %v781 = vpop.f32.mrb[0].mxu0
      %v782 = vadd.f32 0.0, %v781
      %v783 = vpop.f32.mrb[0].mxu0
      %v784 = vpop.f32.mrb[0].mxu0
      %v785 = vadd.f32 0.0, %v784
      %v786 = vpop.f32.mrb[0].mxu0
      %787 = vdwg.mxu0
      %v788 = vadd.f32 %v658, %v739
      %v789 = vadd.f32 %v659, %v741
      %v790 = vadd.f32 %v660, %v782
      %v791 = vadd.f32 %v661, %v743
      %v792 = vadd.f32 %v662, %v745
      %v793 = vadd.f32 %v663, %v785
      %v794 = vld [vmem:[%s165] sm:$0x77]
      %v795 = vld [vmem:[%s165 + $0x8] sm:$0x7]
      %v797 = vcombine.high %v794, %v794
      %v799 = vpack.c.bf16 %v794, %v794
      %v800 = vpack.c.bf16 %v797, %v797
      %v801 = vpack.c.bf16 %v795, %v795
      %s802 = scalar_lea.vmem %s1, 40
      %v803 = vld [vmem:[%s802] sm:$0xf]
      %v804 = vld [vmem:[%s802 + $0x4] sm:$0x1]
      %v807 = vunpack.c.l.b16 %v803
      %v808 = vunpack.c.l.b16 %v804
      %v809 = vpack.c.b16 %v808, %v807
      %813 = vrot.lane.b32.xlu0 %v799, 108
      %v814 = vpop.permute.xlu0 %813
      %815 = vrot.lane.b32.xlu0 %v800, 108
      %v816 = vpop.permute.xlu0 %815
      %817 = vrot.lane.b32.xlu0 %v801, 108
      %v818 = vpop.permute.xlu0 %817
      %vm819 = vcmask 883712
      %v820 = vsel %vm819, %v814, %v816
      %v821 = vsel %vm819, %v816, %v818
      %v823 = vsel %vm202, %v809, 0
      %v826 = vand.u32 %v820, %v209
      %v829 = vand.u32 %v821, %v209
      %v832 = vand.u32 %v818, %v209
      %834 = vmatprep.subr.bf16.mxu0 %v829
      %835 = vmatpush1.bf16.msra.mxu0 %v826
      %836 = vmatprep.subr.bf16.mxu0 0
      %837 = vmatpush1.bf16.msra.mxu0 0
      %838 = vmatprep.subr.bf16.mxu0 0
      %839 = vmatpush1.bf16.msra.mxu0 0
      %840 = vmatprep.subr.bf16.mxu0 0
      %841 = vmatpush1.bf16.msra.mxu0 0
      %842 = vmatprep.subr.bf16.mxu0 0
      %843 = vmatpush1.bf16.msra.mxu0 0
      %844 = vmatprep.subr.bf16.mxu0 0
      %845 = vmatpush1.bf16.msra.mxu0 0
      %846 = vmatprep.subr.bf16.mxu0 0
      %847 = vmatpush1.bf16.msra.mxu0 0
      %848 = vmatprep.subr.bf16.mxu0 0
      %849 = vmatpush1.bf16.msra.mxu0 0
      %850 = vmatprep.subr.bf16.mxu0 0
      %851 = vmatpush1.bf16.msra.mxu0 0
      %852 = vmatprep.subr.bf16.mxu0 0
      %853 = vmatpush1.bf16.msra.mxu0 0
      %854 = vmatprep.subr.bf16.mxu0 0
      %855 = vmatpush1.bf16.msra.mxu0 0
      %856 = vmatprep.subr.bf16.mxu0 0
      %857 = vmatpush1.bf16.msra.mxu0 0
      %858 = vmatprep.subr.bf16.mxu0 0
      %859 = vmatpush1.bf16.msra.mxu0 0
      %860 = vmatprep.subr.bf16.mxu0 0
      %861 = vmatpush1.bf16.msra.mxu0 0
      %862 = vmatprep.subr.bf16.mxu0 0
      %863 = vmatpush1.bf16.msra.mxu0 0
      %864 = vmatprep.subr.bf16.mxu0 0
      %865 = vmatpush1.bf16.msra.mxu0 0
      %866 = vmatprep.mubr.bf16.mxu0 0
      %867 = vmatmul.mubr.bf16.gmra.mrb[0].mxu0 %v823
      %v868 = vpop.f32.mrb[0].mxu0
      %v869 = vadd.f32 0.0, %v868
      %v870 = vpop.f32.mrb[0].mxu0
      %v871 = vadd.f32 0.0, %v870
      %v872 = vpop.f32.mrb[0].mxu0
      %v873 = vadd.f32 0.0, %v872
      %v874 = vpop.f32.mrb[0].mxu0
      %v875 = vadd.f32 0.0, %v874
      %876 = vdwg.mxu0
      %877 = vmatprep.subr.bf16.mxu0 0
      %878 = vmatpush1.bf16.msra.mxu0 %v832
      %879 = vmatprep.subr.bf16.mxu0 0
      %880 = vmatpush1.bf16.msra.mxu0 0
      %881 = vmatprep.subr.bf16.mxu0 0
      %882 = vmatpush1.bf16.msra.mxu0 0
      %883 = vmatprep.subr.bf16.mxu0 0
      %884 = vmatpush1.bf16.msra.mxu0 0
      %885 = vmatprep.subr.bf16.mxu0 0
      %886 = vmatpush1.bf16.msra.mxu0 0
      %887 = vmatprep.subr.bf16.mxu0 0
      %888 = vmatpush1.bf16.msra.mxu0 0
      %889 = vmatprep.subr.bf16.mxu0 0
      %890 = vmatpush1.bf16.msra.mxu0 0
      %891 = vmatprep.subr.bf16.mxu0 0
      %892 = vmatpush1.bf16.msra.mxu0 0
      %893 = vmatprep.subr.bf16.mxu0 0
      %894 = vmatpush1.bf16.msra.mxu0 0
      %895 = vmatprep.subr.bf16.mxu0 0
      %896 = vmatpush1.bf16.msra.mxu0 0
      %897 = vmatprep.subr.bf16.mxu0 0
      %898 = vmatpush1.bf16.msra.mxu0 0
      %899 = vmatprep.subr.bf16.mxu0 0
      %900 = vmatpush1.bf16.msra.mxu0 0
      %901 = vmatprep.subr.bf16.mxu0 0
      %902 = vmatpush1.bf16.msra.mxu0 0
      %903 = vmatprep.subr.bf16.mxu0 0
      %904 = vmatpush1.bf16.msra.mxu0 0
      %905 = vmatprep.subr.bf16.mxu0 0
      %906 = vmatpush1.bf16.msra.mxu0 0
      %907 = vmatprep.subr.bf16.mxu0 0
      %908 = vmatpush1.bf16.msra.mxu0 0
      %909 = vmatprep.mubr.bf16.mxu0 0
      %910 = vmatmul.mubr.bf16.gmra.mrb[0].mxu0 %v823
      %v911 = vpop.f32.mrb[0].mxu0
      %v912 = vadd.f32 0.0, %v911
      %v913 = vpop.f32.mrb[0].mxu0
      %v914 = vpop.f32.mrb[0].mxu0
      %v915 = vadd.f32 0.0, %v914
      %v916 = vpop.f32.mrb[0].mxu0
      %917 = vdwg.mxu0
      %v918 = vadd.f32 %v788, %v869
      %v919 = vadd.f32 %v789, %v871
      %v920 = vadd.f32 %v790, %v912
      %v921 = vadd.f32 %v791, %v873
      %v922 = vadd.f32 %v792, %v875
      %v923 = vadd.f32 %v793, %v915
      %v924 = vld [vmem:[%s165] sm:$0x77]
      %v925 = vld [vmem:[%s165 + $0x8] sm:$0x7]
      %v927 = vcombine.high %v924, %v924
      %v929 = vpack.c.bf16 %v924, %v924
      %v930 = vpack.c.bf16 %v927, %v927
      %v931 = vpack.c.bf16 %v925, %v925
      %s932 = scalar_lea.vmem %s1, 48
      %v933 = vld [vmem:[%s932] sm:$0xf]
      %v934 = vld [vmem:[%s932 + $0x4] sm:$0x1]
      %v937 = vunpack.c.l.b16 %v933
      %v938 = vunpack.c.l.b16 %v934
      %v939 = vpack.c.b16 %v938, %v937
      %943 = vrot.lane.b32.xlu0 %v929, 92
      %v944 = vpop.permute.xlu0 %943
      %945 = vrot.lane.b32.xlu0 %v930, 92
      %v946 = vpop.permute.xlu0 %945
      %947 = vrot.lane.b32.xlu0 %v931, 92
      %v948 = vpop.permute.xlu0 %947
      %vm949 = vcmask 752640
      %v950 = vsel %vm949, %v944, %v946
      %v951 = vsel %vm949, %v946, %v948
      %v953 = vsel %vm202, %v939, 0
      %v956 = vand.u32 %v950, %v209
      %v959 = vand.u32 %v951, %v209
      %v962 = vand.u32 %v948, %v209
      %964 = vmatprep.subr.bf16.mxu0 %v959
      %965 = vmatpush1.bf16.msra.mxu0 %v956
      %966 = vmatprep.subr.bf16.mxu0 0
      %967 = vmatpush1.bf16.msra.mxu0 0
      %968 = vmatprep.subr.bf16.mxu0 0
      %969 = vmatpush1.bf16.msra.mxu0 0
      %970 = vmatprep.subr.bf16.mxu0 0
      %971 = vmatpush1.bf16.msra.mxu0 0
      %972 = vmatprep.subr.bf16.mxu0 0
      %973 = vmatpush1.bf16.msra.mxu0 0
      %974 = vmatprep.subr.bf16.mxu0 0
      %975 = vmatpush1.bf16.msra.mxu0 0
      %976 = vmatprep.subr.bf16.mxu0 0
      %977 = vmatpush1.bf16.msra.mxu0 0
      %978 = vmatprep.subr.bf16.mxu0 0
      %979 = vmatpush1.bf16.msra.mxu0 0
      %980 = vmatprep.subr.bf16.mxu0 0
      %981 = vmatpush1.bf16.msra.mxu0 0
      %982 = vmatprep.subr.bf16.mxu0 0
      %983 = vmatpush1.bf16.msra.mxu0 0
      %984 = vmatprep.subr.bf16.mxu0 0
      %985 = vmatpush1.bf16.msra.mxu0 0
      %986 = vmatprep.subr.bf16.mxu0 0
      %987 = vmatpush1.bf16.msra.mxu0 0
      %988 = vmatprep.subr.bf16.mxu0 0
      %989 = vmatpush1.bf16.msra.mxu0 0
      %990 = vmatprep.subr.bf16.mxu0 0
      %991 = vmatpush1.bf16.msra.mxu0 0
      %992 = vmatprep.subr.bf16.mxu0 0
      %993 = vmatpush1.bf16.msra.mxu0 0
      %994 = vmatprep.subr.bf16.mxu0 0
      %995 = vmatpush1.bf16.msra.mxu0 0
      %996 = vmatprep.mubr.bf16.mxu0 0
      %997 = vmatmul.mubr.bf16.gmra.mrb[0].mxu0 %v953
      %v998 = vpop.f32.mrb[0].mxu0
      %v999 = vadd.f32 0.0, %v998
      %v1000 = vpop.f32.mrb[0].mxu0
      %v1001 = vadd.f32 0.0, %v1000
      %v1002 = vpop.f32.mrb[0].mxu0
      %v1003 = vadd.f32 0.0, %v1002
      %v1004 = vpop.f32.mrb[0].mxu0
      %v1005 = vadd.f32 0.0, %v1004
      %1006 = vdwg.mxu0
      %1007 = vmatprep.subr.bf16.mxu0 0
      %1008 = vmatpush1.bf16.msra.mxu0 %v962
      %1009 = vmatprep.subr.bf16.mxu0 0
      %1010 = vmatpush1.bf16.msra.mxu0 0
      %1011 = vmatprep.subr.bf16.mxu0 0
      %1012 = vmatpush1.bf16.msra.mxu0 0
      %1013 = vmatprep.subr.bf16.mxu0 0
      %1014 = vmatpush1.bf16.msra.mxu0 0
      %1015 = vmatprep.subr.bf16.mxu0 0
      %1016 = vmatpush1.bf16.msra.mxu0 0
      %1017 = vmatprep.subr.bf16.mxu0 0
      %1018 = vmatpush1.bf16.msra.mxu0 0
      %1019 = vmatprep.subr.bf16.mxu0 0
      %1020 = vmatpush1.bf16.msra.mxu0 0
      %1021 = vmatprep.subr.bf16.mxu0 0
      %1022 = vmatpush1.bf16.msra.mxu0 0
      %1023 = vmatprep.subr.bf16.mxu0 0
      %1024 = vmatpush1.bf16.msra.mxu0 0
      %1025 = vmatprep.subr.bf16.mxu0 0
      %1026 = vmatpush1.bf16.msra.mxu0 0
      %1027 = vmatprep.subr.bf16.mxu0 0
      %1028 = vmatpush1.bf16.msra.mxu0 0
      %1029 = vmatprep.subr.bf16.mxu0 0
      %1030 = vmatpush1.bf16.msra.mxu0 0
      %1031 = vmatprep.subr.bf16.mxu0 0
      %1032 = vmatpush1.bf16.msra.mxu0 0
      %1033 = vmatprep.subr.bf16.mxu0 0
      %1034 = vmatpush1.bf16.msra.mxu0 0
      %1035 = vmatprep.subr.bf16.mxu0 0
      %1036 = vmatpush1.bf16.msra.mxu0 0
      %1037 = vmatprep.subr.bf16.mxu0 0
      %1038 = vmatpush1.bf16.msra.mxu0 0
      %1039 = vmatprep.mubr.bf16.mxu0 0
      %1040 = vmatmul.mubr.bf16.gmra.mrb[0].mxu0 %v953
      %v1041 = vpop.f32.mrb[0].mxu0
      %v1042 = vadd.f32 0.0, %v1041
      %v1043 = vpop.f32.mrb[0].mxu0
      %v1044 = vpop.f32.mrb[0].mxu0
      %v1045 = vadd.f32 0.0, %v1044
      %v1046 = vpop.f32.mrb[0].mxu0
      %1047 = vdwg.mxu0
      %v1048 = vadd.f32 %v918, %v999
      %v1049 = vadd.f32 %v919, %v1001
      %v1050 = vadd.f32 %v920, %v1042
      %v1051 = vadd.f32 %v921, %v1003
      %v1052 = vadd.f32 %v922, %v1005
      %v1053 = vadd.f32 %v923, %v1045
      %v1054 = vld [vmem:[%s165] sm:$0x77]
      %v1055 = vld [vmem:[%s165 + $0x8] sm:$0x7]
      %v1057 = vcombine.high %v1054, %v1054
      %v1059 = vpack.c.bf16 %v1054, %v1054
      %v1060 = vpack.c.bf16 %v1057, %v1057
      %v1061 = vpack.c.bf16 %v1055, %v1055
      %s1062 = scalar_lea.vmem %s1, 56
      %v1063 = vld [vmem:[%s1062] sm:$0xf]
      %v1064 = vld [vmem:[%s1062 + $0x4] sm:$0x1]
      %v1067 = vunpack.c.l.b16 %v1063
      %v1068 = vunpack.c.l.b16 %v1064
      %v1069 = vpack.c.b16 %v1068, %v1067
      %1073 = vrot.lane.b32.xlu0 %v1059, 91
      %v1074 = vpop.permute.xlu0 %1073
      %1075 = vrot.lane.b32.xlu0 %v1060, 91
      %v1076 = vpop.permute.xlu0 %1075
      %1077 = vrot.lane.b32.xlu0 %v1061, 91
      %v1078 = vpop.permute.xlu0 %1077
      %vm1079 = vcmask 744448
      %v1080 = vsel %vm1079, %v1074, %v1076
      %v1081 = vsel %vm1079, %v1076, %v1078
      %v1083 = vsel %vm202, %v1069, 0
      %v1086 = vand.u32 %v1080, %v209
      %v1089 = vand.u32 %v1081, %v209
      %v1092 = vand.u32 %v1078, %v209
      %1094 = vmatprep.subr.bf16.mxu0 %v1089
      %1095 = vmatpush1.bf16.msra.mxu0 %v1086
      %1096 = vmatprep.subr.bf16.mxu0 0
      %1097 = vmatpush1.bf16.msra.mxu0 0
      %1098 = vmatprep.subr.bf16.mxu0 0
      %1099 = vmatpush1.bf16.msra.mxu0 0
      %1100 = vmatprep.subr.bf16.mxu0 0
      %1101 = vmatpush1.bf16.msra.mxu0 0
      %1102 = vmatprep.subr.bf16.mxu0 0
      %1103 = vmatpush1.bf16.msra.mxu0 0
      %1104 = vmatprep.subr.bf16.mxu0 0
      %1105 = vmatpush1.bf16.msra.mxu0 0
      %1106 = vmatprep.subr.bf16.mxu0 0
      %1107 = vmatpush1.bf16.msra.mxu0 0
      %1108 = vmatprep.subr.bf16.mxu0 0
      %1109 = vmatpush1.bf16.msra.mxu0 0
      %1110 = vmatprep.subr.bf16.mxu0 0
      %1111 = vmatpush1.bf16.msra.mxu0 0
      %1112 = vmatprep.subr.bf16.mxu0 0
      %1113 = vmatpush1.bf16.msra.mxu0 0
      %1114 = vmatprep.subr.bf16.mxu0 0
      %1115 = vmatpush1.bf16.msra.mxu0 0
      %1116 = vmatprep.subr.bf16.mxu0 0
      %1117 = vmatpush1.bf16.msra.mxu0 0
      %1118 = vmatprep.subr.bf16.mxu0 0
      %1119 = vmatpush1.bf16.msra.mxu0 0
      %1120 = vmatprep.subr.bf16.mxu0 0
      %1121 = vmatpush1.bf16.msra.mxu0 0
      %1122 = vmatprep.subr.bf16.mxu0 0
      %1123 = vmatpush1.bf16.msra.mxu0 0
      %1124 = vmatprep.subr.bf16.mxu0 0
      %1125 = vmatpush1.bf16.msra.mxu0 0
      %1126 = vmatprep.mubr.bf16.mxu0 0
      %1127 = vmatmul.mubr.bf16.gmra.mrb[0].mxu0 %v1083
      %v1128 = vpop.f32.mrb[0].mxu0
      %v1129 = vadd.f32 0.0, %v1128
      %v1130 = vpop.f32.mrb[0].mxu0
      %v1131 = vadd.f32 0.0, %v1130
      %v1132 = vpop.f32.mrb[0].mxu0
      %v1133 = vadd.f32 0.0, %v1132
      %v1134 = vpop.f32.mrb[0].mxu0
      %v1135 = vadd.f32 0.0, %v1134
      %1136 = vdwg.mxu0
      %1137 = vmatprep.subr.bf16.mxu0 0
      %1138 = vmatpush1.bf16.msra.mxu0 %v1092
      %1139 = vmatprep.subr.bf16.mxu0 0
      %1140 = vmatpush1.bf16.msra.mxu0 0
      %1141 = vmatprep.subr.bf16.mxu0 0
      %1142 = vmatpush1.bf16.msra.mxu0 0
      %1143 = vmatprep.subr.bf16.mxu0 0
      %1144 = vmatpush1.bf16.msra.mxu0 0
      %1145 = vmatprep.subr.bf16.mxu0 0
      %1146 = vmatpush1.bf16.msra.mxu0 0
      %1147 = vmatprep.subr.bf16.mxu0 0
      %1148 = vmatpush1.bf16.msra.mxu0 0
      %1149 = vmatprep.subr.bf16.mxu0 0
      %1150 = vmatpush1.bf16.msra.mxu0 0
      %1151 = vmatprep.subr.bf16.mxu0 0
      %1152 = vmatpush1.bf16.msra.mxu0 0
      %1153 = vmatprep.subr.bf16.mxu0 0
      %1154 = vmatpush1.bf16.msra.mxu0 0
      %1155 = vmatprep.subr.bf16.mxu0 0
      %1156 = vmatpush1.bf16.msra.mxu0 0
      %1157 = vmatprep.subr.bf16.mxu0 0
      %1158 = vmatpush1.bf16.msra.mxu0 0
      %1159 = vmatprep.subr.bf16.mxu0 0
      %1160 = vmatpush1.bf16.msra.mxu0 0
      %1161 = vmatprep.subr.bf16.mxu0 0
      %1162 = vmatpush1.bf16.msra.mxu0 0
      %1163 = vmatprep.subr.bf16.mxu0 0
      %1164 = vmatpush1.bf16.msra.mxu0 0
      %1165 = vmatprep.subr.bf16.mxu0 0
      %1166 = vmatpush1.bf16.msra.mxu0 0
      %1167 = vmatprep.subr.bf16.mxu0 0
      %1168 = vmatpush1.bf16.msra.mxu0 0
      %1169 = vmatprep.mubr.bf16.mxu0 0
      %1170 = vmatmul.mubr.bf16.gmra.mrb[0].mxu0 %v1083
      %v1171 = vpop.f32.mrb[0].mxu0
      %v1172 = vadd.f32 0.0, %v1171
      %v1173 = vpop.f32.mrb[0].mxu0
      %v1174 = vpop.f32.mrb[0].mxu0
      %v1175 = vadd.f32 0.0, %v1174
      %v1176 = vpop.f32.mrb[0].mxu0
      %1177 = vdwg.mxu0
      %v1178 = vadd.f32 %v1048, %v1129
      %v1179 = vadd.f32 %v1049, %v1131
      %v1180 = vadd.f32 %v1050, %v1172
      %v1181 = vadd.f32 %v1051, %v1133
      %v1182 = vadd.f32 %v1052, %v1135
      %v1183 = vadd.f32 %v1053, %v1175
      %v1184 = vld [vmem:[%s165] sm:$0x77]
      %v1185 = vld [vmem:[%s165 + $0x8] sm:$0x7]
      %v1187 = vcombine.high %v1184, %v1184
      %v1189 = vpack.c.bf16 %v1184, %v1184
      %v1190 = vpack.c.bf16 %v1187, %v1187
      %v1191 = vpack.c.bf16 %v1185, %v1185
      %s1192 = scalar_lea.vmem %s1, 64
      %v1193 = vld [vmem:[%s1192] sm:$0xf]
      %v1194 = vld [vmem:[%s1192 + $0x4] sm:$0x1]
      %v1197 = vunpack.c.l.b16 %v1193
      %v1198 = vunpack.c.l.b16 %v1194
      %v1199 = vpack.c.b16 %v1198, %v1197
      %1203 = vrot.lane.b32.xlu0 %v1189, 90
      %v1204 = vpop.permute.xlu0 %1203
      %1205 = vrot.lane.b32.xlu0 %v1190, 90
      %v1206 = vpop.permute.xlu0 %1205
      %1207 = vrot.lane.b32.xlu0 %v1191, 90
      %v1208 = vpop.permute.xlu0 %1207
      %vm1209 = vcmask 736256
      %v1210 = vsel %vm1209, %v1204, %v1206
      %v1211 = vsel %vm1209, %v1206, %v1208
      %v1213 = vsel %vm202, %v1199, 0
      %v1216 = vand.u32 %v1210, %v209
      %v1219 = vand.u32 %v1211, %v209
      %v1222 = vand.u32 %v1208, %v209
      %1224 = vmatprep.subr.bf16.mxu0 %v1219
      %1225 = vmatpush1.bf16.msra.mxu0 %v1216
      %1226 = vmatprep.subr.bf16.mxu0 0
      %1227 = vmatpush1.bf16.msra.mxu0 0
      %1228 = vmatprep.subr.bf16.mxu0 0
      %1229 = vmatpush1.bf16.msra.mxu0 0
      %1230 = vmatprep.subr.bf16.mxu0 0
      %1231 = vmatpush1.bf16.msra.mxu0 0
      %1232 = vmatprep.subr.bf16.mxu0 0
      %1233 = vmatpush1.bf16.msra.mxu0 0
      %1234 = vmatprep.subr.bf16.mxu0 0
      %1235 = vmatpush1.bf16.msra.mxu0 0
      %1236 = vmatprep.subr.bf16.mxu0 0
      %1237 = vmatpush1.bf16.msra.mxu0 0
      %1238 = vmatprep.subr.bf16.mxu0 0
      %1239 = vmatpush1.bf16.msra.mxu0 0
      %1240 = vmatprep.subr.bf16.mxu0 0
      %1241 = vmatpush1.bf16.msra.mxu0 0
      %1242 = vmatprep.subr.bf16.mxu0 0
      %1243 = vmatpush1.bf16.msra.mxu0 0
      %1244 = vmatprep.subr.bf16.mxu0 0
      %1245 = vmatpush1.bf16.msra.mxu0 0
      %1246 = vmatprep.subr.bf16.mxu0 0
      %1247 = vmatpush1.bf16.msra.mxu0 0
      %1248 = vmatprep.subr.bf16.mxu0 0
      %1249 = vmatpush1.bf16.msra.mxu0 0
      %1250 = vmatprep.subr.bf16.mxu0 0
      %1251 = vmatpush1.bf16.msra.mxu0 0
      %1252 = vmatprep.subr.bf16.mxu0 0
      %1253 = vmatpush1.bf16.msra.mxu0 0
      %1254 = vmatprep.subr.bf16.mxu0 0
      %1255 = vmatpush1.bf16.msra.mxu0 0
      %1256 = vmatprep.mubr.bf16.mxu0 0
      %1257 = vmatmul.mubr.bf16.gmra.mrb[0].mxu0 %v1213
      %v1258 = vpop.f32.mrb[0].mxu0
      %v1259 = vadd.f32 0.0, %v1258
      %v1260 = vpop.f32.mrb[0].mxu0
      %v1261 = vadd.f32 0.0, %v1260
      %v1262 = vpop.f32.mrb[0].mxu0
      %v1263 = vadd.f32 0.0, %v1262
      %v1264 = vpop.f32.mrb[0].mxu0
      %v1265 = vadd.f32 0.0, %v1264
      %1266 = vdwg.mxu0
      %1267 = vmatprep.subr.bf16.mxu0 0
      %1268 = vmatpush1.bf16.msra.mxu0 %v1222
      %1269 = vmatprep.subr.bf16.mxu0 0
      %1270 = vmatpush1.bf16.msra.mxu0 0
      %1271 = vmatprep.subr.bf16.mxu0 0
      %1272 = vmatpush1.bf16.msra.mxu0 0
      %1273 = vmatprep.subr.bf16.mxu0 0
      %1274 = vmatpush1.bf16.msra.mxu0 0
      %1275 = vmatprep.subr.bf16.mxu0 0
      %1276 = vmatpush1.bf16.msra.mxu0 0
      %1277 = vmatprep.subr.bf16.mxu0 0
      %1278 = vmatpush1.bf16.msra.mxu0 0
      %1279 = vmatprep.subr.bf16.mxu0 0
      %1280 = vmatpush1.bf16.msra.mxu0 0
      %1281 = vmatprep.subr.bf16.mxu0 0
      %1282 = vmatpush1.bf16.msra.mxu0 0
      %1283 = vmatprep.subr.bf16.mxu0 0
      %1284 = vmatpush1.bf16.msra.mxu0 0
      %1285 = vmatprep.subr.bf16.mxu0 0
      %1286 = vmatpush1.bf16.msra.mxu0 0
      %1287 = vmatprep.subr.bf16.mxu0 0
      %1288 = vmatpush1.bf16.msra.mxu0 0
      %1289 = vmatprep.subr.bf16.mxu0 0
      %1290 = vmatpush1.bf16.msra.mxu0 0
      %1291 = vmatprep.subr.bf16.mxu0 0
      %1292 = vmatpush1.bf16.msra.mxu0 0
      %1293 = vmatprep.subr.bf16.mxu0 0
      %1294 = vmatpush1.bf16.msra.mxu0 0
      %1295 = vmatprep.subr.bf16.mxu0 0
      %1296 = vmatpush1.bf16.msra.mxu0 0
      %1297 = vmatprep.subr.bf16.mxu0 0
      %1298 = vmatpush1.bf16.msra.mxu0 0
      %1299 = vmatprep.mubr.bf16.mxu0 0
      %1300 = vmatmul.mubr.bf16.gmra.mrb[0].mxu0 %v1213
      %v1301 = vpop.f32.mrb[0].mxu0
      %v1302 = vadd.f32 0.0, %v1301
      %v1303 = vpop.f32.mrb[0].mxu0
      %v1304 = vpop.f32.mrb[0].mxu0
      %v1305 = vadd.f32 0.0, %v1304
      %v1306 = vpop.f32.mrb[0].mxu0
      %1307 = vdwg.mxu0
      %v1308 = vadd.f32 %v1178, %v1259
      %v1309 = vadd.f32 %v1179, %v1261
      %v1310 = vadd.f32 %v1180, %v1302
      %v1311 = vadd.f32 %v1181, %v1263
      %v1312 = vadd.f32 %v1182, %v1265
      %v1313 = vadd.f32 %v1183, %v1305
      %v1314 = vld [vmem:[%s2] sm:$0xff]
      %v1315 = vld [vmem:[%s2 + $0x8] sm:$0x3]
      %1317 = vset.pattern.permute.xlu0 0
      %1318 = vperm.xlu0 %1317, %v1314
      %v1319 = vpop.permute.xlu0 %1318
      %1322 = vset.pattern.permute.xlu0 0
      %1323 = vperm.xlu0 %1322, %v1315
      %v1324 = vpop.permute.xlu0 %1323
      %v1326 = vadd.f32 %v1308, %v1319
      %v1327 = vadd.f32 %v1309, %v1319
      %v1328 = vadd.f32 %v1310, %v1319
      %v1329 = vadd.f32 %v1311, %v1324
      %v1330 = vadd.f32 %v1312, %v1324
      %v1331 = vadd.f32 %v1313, %v1324
      %v1332 = vmax.f32 %v1326, 0.0
      %v1333 = vmax.f32 %v1327, 0.0
      %v1334 = vmax.f32 %v1328, 0.0
      %v1335 = vmax.f32 %v1329, 0.0
      %v1336 = vmax.f32 %v1330, 0.0
      %v1337 = vmax.f32 %v1331, 0.0
      %v1338 = vpack.c.bf16 %v1335, %v1332
      %v1339 = vpack.c.bf16 %v1336, %v1333
      %v1340 = vpack.c.bf16 %v1337, %v1334
      %v1344 = vunpack.c.l.b16 %v1338
      %v1345 = vunpack.c.l.b16 %v1339
      %v1346 = vunpack.c.l.b16 %v1340
      %v1347 = vunpack.c.h.b16 %v1338
      %v1348 = vunpack.c.h.b16 %v1339
      %v1349 = vunpack.c.h.b16 %v1340
      %v1350 = vpack.c.b16 %v1345, %v1344
      %v1351 = vpack.c.b16 %v1346, %v1346
      %v1352 = vpack.c.b16 %v1348, %v1347
      %v1353 = vpack.c.b16 %v1349, %v1349
      %1358 = vst [vmem:[%s170] sm:$0xff] %v1350
      %vm1359 = vcmask 257024
      %1360 = vst.msk [vmem:[%s170 + $0x8] sm:$0xf] %vm1359, %v1351
      %1361 = vst [vmem:[%s170 + $0xc] sm:$0x11] %v1352
      %vm1362 = vcmask 253952
      %1363 = vst.msk [vmem:[%s170 + $0x14] sm:$0x1] %vm1362, %v1353
      %p1364 = scmp.lt.s32.totalorder %s14, 3
      %s1365 = scalar_select %p1364, %s14, 3
      %s1366 = smul.addr %s1365, 6
      %s1367 = smul.addr %s1366, 4
      %s1368 = scalar_lea.vmem %s3, %s1367
      // Predicated region
      $region33: #{tpu_custom_call.1} parent=31 // pred_check
        %p1369 = pneg %p100
      $region34: #{tpu_custom_call.1} parent=31 // pred_check_branch
        %1371 = sbr.rel (%p1369) target = $region36
      $region35: #{tpu_custom_call.1} parent=31 // pred_region
        _
      $region36: #{tpu_custom_call.1} parent=31 // pred_fallthru
        _
    $region32: #{tpu_custom_call.1} parent=5 // pred_fallthru
      _
    %p1372 = scmp.le.s32.totalorder 2, %s9
    // Predicated region
    $region37: #{tpu_custom_call.1} parent=5 // pred_check
      %p1373 = pneg %p1372
    $region38: #{tpu_custom_call.1} parent=5 // pred_check_branch
      %1375 = sbr.rel (%p1373) target = $region40
    $region39: #{tpu_custom_call.1} parent=5 // pred_region
      %s1376 = ssub.s32 %s9, 2
      // Predicated region
      $region41: #{tpu_custom_call.1} parent=39 // pred_check
        %p1377 = pneg %p106
      $region42: #{tpu_custom_call.1} parent=39 // pred_check_branch
        %1379 = sbr.rel (%p1377) target = $region44
      $region43: #{tpu_custom_call.1} parent=39 // pred_region
        %p1380 = scmp.lt.s32.totalorder %s15, 3
        %s1381 = scalar_select %p1380, %s15, 3
        %s1382 = smul.addr %s1381, 6
        %s1383 = smul.addr %s1382, 4
        %s1384 = scalar_lea.vmem %s3, %s1383
      $region44: #{tpu_custom_call.1} parent=39 // pred_fallthru
        _
    $region40: #{tpu_custom_call.1} parent=5 // pred_fallthru
      _
  $region6: #{tpu_custom_call.1} parent=0 // loop_footer
    %s13 = sadd.s32 1, %s9
  $region7: #{tpu_custom_call.1} parent=0 // loop_footer_branch
    %8 = sbr.rel target = $region3
  $region8: #{tpu_custom_call.1} parent=0 // loop_exit
    _

</llo_original>
